<compile_context>
chip_gen: v5e
topology: v5e:2x2
jax: 0.10.0
libtpu: 0.0.40
codegen_flags: <defaults>
</compile_context>

<pallas_src>
import numpy as np
import jax
import jax.numpy as jnp
from jax import lax
from jax.experimental import pallas as pl
from jax.experimental.pallas import tpu as pltpu

K = 3            # ksize (padding=1 'SAME' conv)
BN_EPS = 1e-5
MAX_ROWS = 256   # target MXU M per grid step (v6e/v7x systolic height)


# ------------------------- wrapper-side constant builders -------------------

def _row_toeplitz(w_hwio, w_sp):
    """(K,K,Cin,Co) conv weights -> (K, w_sp*Cin, w_sp*Co) row-Toeplitz blocks.

    R[dy, wi*Cin+ci, wo*Co+co] = w[dy, wi-wo+K//2, ci, co] (0 if the tap is out of
    range), so sum_dy row(h+dy-1) @ R[dy] is the 'SAME' 3x3 conv of output row h with
    the zero-pad halo handled implicitly by the Toeplitz zero structure.
    """
    k, _, cin, co = w_hwio.shape
    wi = jnp.arange(w_sp)[:, None]
    wo = jnp.arange(w_sp)[None, :]
    dx = wi - wo + (k // 2)
    valid = (dx >= 0) & (dx < k)
    dxc = jnp.clip(dx, 0, k - 1)
    g = w_hwio[:, dxc]                                       # (k, w_sp, w_sp, cin, co)
    g = jnp.where(valid[None, :, :, None, None], g, 0.0)
    g = jnp.transpose(g, (0, 1, 3, 2, 4))                    # (k, wi, cin, wo, co)
    return g.reshape(k, w_sp * cin, w_sp * co)


def _shuffle_fold_maps(W, out_ch, r):
    """Column permutation that folds PixelShuffle into conv1's output columns.

    New column index: colp = i*L + (w*r + j)*out_ch + co  (L = W*r*out_ch), for the
    conv1 channel c1 = co*r^2 + i*r + j at width w.  Returns (src_col_for_new_col,
    channel_of_new_col).
    """
    C1 = out_ch * r * r
    L = W * r * out_ch
    perm_src = np.empty((r * L,), np.int32)
    chan_of_col = np.empty((r * L,), np.int32)
    for i in range(r):
        for w in range(W):
            for j in range(r):
                for co in range(out_ch):
                    colp = i * L + (w * r + j) * out_ch + co
                    c1 = co * r * r + i * r + j
                    perm_src[colp] = w * C1 + c1
                    chan_of_col[colp] = c1
    return perm_src, chan_of_col


# ------------------------------- forward ------------------------------------

def upsample_block_forward(x_nchw, params, up_scale=2):
    w1, b1 = params["w1"], params["b1"]
    gamma, beta = params["gamma"], params["beta"]
    alpha = params["alpha"]
    w2, b2 = params["w2"], params["b2"]

    N, Cin, H, W = x_nchw.shape
    out_ch = alpha.shape[0]
    r = up_scale
    C1 = out_ch * r * r
    Ho, Wo = H * r, W * r
    L = Wo * out_ch                      # lanes of one shuffled output row
    rL = r * L                           # = W*C1, lanes of one (folded) conv1 row
    f32, bf16 = jnp.float32, jnp.bfloat16

    # ---- pack images into row blocks so MXU M ~ MAX_ROWS (rec 1) -----------
    nb = 1
    for d in range(N, 0, -1):
        if N % d == 0 and d * H <= MAX_ROWS:
            nb = d
            break
    NB = N // nb
    nbH = nb * H
    assert (nbH % 8 == 0) or NB == 1, "row-block must be sublane aligned"

    npix_blk = nbH * W                   # pixels per channel per block
    n_tot = N * H * W                    # pixels per channel total (BN batch stats)

    # ---- constants: Toeplitz weights with pixel-shuffle folded in (rec 4) ---
    perm_src_np, chan_np = _shuffle_fold_maps(W, out_ch, r)
    perm_src = jnp.asarray(perm_src_np)

    w1_hwio = jnp.transpose(w1, (2, 3, 1, 0)).astype(f32)
    w2_hwio = jnp.transpose(w2, (2, 3, 1, 0)).astype(f32)
    r1p = _row_toeplitz(w1_hwio, W)[:, :, perm_src].astype(bf16)   # (K, W*Cin, rL)
    r2 = _row_toeplitz(w2_hwio, Wo).astype(bf16)                   # (K, L, L)

    b1_full = jnp.tile(b1.astype(f32), W)[perm_src].reshape(1, rL)
    b2_full = jnp.tile(b2.astype(f32), Wo).reshape(1, L)
    alpha_full = jnp.tile(alpha.astype(f32), Wo).reshape(1, L)
    bn_par = jnp.stack([gamma.astype(f32), beta.astype(f32)], axis=0)       # (2, C1)

    psum = jnp.asarray((chan_np[:, None] == np.arange(C1)[None, :])
                       .astype(np.float32))                                  # (rL, C1)
    bcast = jnp.transpose(psum)                                              # (C1, rL)

    x_rows = (jnp.transpose(x_nchw, (0, 2, 3, 1))
              .reshape(NB, nbH, W * Cin).astype(bf16))                       # bf16 MXU lhs

    out_dtype = x_nchw.dtype

    # --------------------------- fused kernel -------------------------------
    def kernel(x_ref, r1_ref, b1_ref, bn_ref, psum_ref, bcast_ref,
               alpha_ref, r2_ref, b2_ref, o_ref, y1_scr, stat_scr, ss_scr):
        p = pl.program_id(0)        # phase: 0 = conv1+stats, 1 = BN+PReLU+conv2
        b = pl.program_id(1)        # image-block index

        row_id = lax.broadcasted_iota(jnp.int32, (nbH, 1), 0)
        not_first = (row_id % H) != 0          # row h-1 exists inside the same image
        not_last = (row_id % H) != (H - 1)     # row h+1 exists inside the same image

        # ------------------------------ phase 0 -----------------------------
        @pl.when(jnp.logical_and(p == 0, b == 0))
        def _():
            stat_scr[...] = jnp.zeros_like(stat_scr)

        @pl.when(p == 0)
        def _():
            x2 = x_ref[0]                                        # (nbH, W*Cin) bf16
            zx = jnp.zeros((1, x2.shape[1]), x2.dtype)
            top = jnp.where(not_first,
                            jnp.concatenate([zx, x2[:nbH - 1]], axis=0),
                            jnp.zeros_like(x2))
            bot = jnp.where(not_last,
                            jnp.concatenate([x2[1:], zx], axis=0),
                            jnp.zeros_like(x2))
            y1 = (jnp.dot(top, r1_ref[0], preferred_element_type=jnp.float32)
                  + jnp.dot(x2, r1_ref[1], preferred_element_type=jnp.float32)
                  + jnp.dot(bot, r1_ref[2], preferred_element_type=jnp.float32)
                  + b1_ref[...])                                 # (nbH, rL) f32
            y1_scr[b] = y1                                       # stays in VMEM (rec 7)

            # per-block centered BN partial stats (lane->channel via tiny MXU dots)
            rowsum = jnp.sum(y1, axis=0, keepdims=True)                       # (1, rL)
            csum = jnp.dot(rowsum, psum_ref[...],
                           preferred_element_type=jnp.float32)                # (1, C1)
            mean_lane = jnp.dot(csum * (1.0 / npix_blk), bcast_ref[...],
                                preferred_element_type=jnp.float32)           # (1, rL)
            cen = y1 - mean_lane
            m2 = jnp.dot(jnp.sum(cen * cen, axis=0, keepdims=True), psum_ref[...],
                         preferred_element_type=jnp.float32)                  # (1, C1)
            stat_scr[...] += jnp.concatenate(
                [csum, csum * csum * (1.0 / npix_blk), m2], axis=0)           # S, Q, M2

        # ------------------------------ phase 1 -----------------------------
        @pl.when(jnp.logical_and(p == 1, b == 0))
        def _():
            s = stat_scr[0:1, :]
            q = stat_scr[1:2, :]
            m2 = stat_scr[2:3, :]
            mean_c = s * (1.0 / n_tot)
            # Chan combination of the per-block centered stats; biased (training) var.
            var_c = (m2 + q - s * mean_c) * (1.0 / n_tot)
            scale_c = bn_ref[0:1, :] * lax.rsqrt(var_c + BN_EPS)
            shift_c = bn_ref[1:2, :] - mean_c * scale_c
            ss_scr[...] = jnp.dot(jnp.concatenate([scale_c, shift_c], axis=0),
                                  bcast_ref[...],
                                  preferred_element_type=jnp.float32)         # (2, rL)

        @pl.when(p == 1)
        def _():
            z = y1_scr[b] * ss_scr[0:1, :] + ss_scr[1:2, :]      # BN affine (f32)
            alpha_l = alpha_ref[...]
            # PixelShuffle already folded into conv1: row class i = lanes [i*L,(i+1)*L).
            A = []
            for i in range(r):
                zi = z[:, i * L:(i + 1) * L]
                A.append(jnp.where(zi > 0, zi, zi * alpha_l).astype(bf16))   # PReLU
            za = jnp.zeros((1, L), bf16)
            for i in range(r):
                if i > 0:                                        # row h*r+i-1
                    prev = A[i - 1]
                else:                                            # class r-1 at h-1
                    prev = jnp.where(not_first,
                                     jnp.concatenate([za, A[r - 1][:nbH - 1]], axis=0),
                                     jnp.zeros_like(A[0]))
                if i < r - 1:                                    # row h*r+i+1
                    nxt = A[i + 1]
                else:                                            # class 0 at h+1
                    nxt = jnp.where(not_last,
                                    jnp.concatenate([A[0][1:], za], axis=0),
                                    jnp.zeros_like(A[0]))
                # conv2: three accumulating dots, no (H, 3L) concat (rec 5).
                out_i = (jnp.dot(prev, r2_ref[0], preferred_element_type=jnp.float32)
                         + jnp.dot(A[i], r2_ref[1], preferred_element_type=jnp.float32)
                         + jnp.dot(nxt, r2_ref[2], preferred_element_type=jnp.float32)
                         + b2_ref[...])
                o_ref[:, i * L:(i + 1) * L] = out_i.astype(o_ref.dtype)

    # ------------------------------ launch -----------------------------------
    flops = int(3 * 2 * N * H * (W * Cin) * rL            # conv1
                + r * 3 * 2 * N * H * L * L)               # conv2
    bytes_accessed = int(x_rows.size * 2 + N * H * rL * 4
                         + (r1p.size + r2.size) * 2
                         + (psum.size + bcast.size) * 4)
    cost = pl.CostEstimate(flops=flops, transcendentals=int(C1),
                           bytes_accessed=bytes_accessed)

    out_slab = pl.pallas_call(
        kernel,
        out_shape=jax.ShapeDtypeStruct((N * H, rL), out_dtype),
        grid=(2, NB),                                     # phase axis first, blocks second
        in_specs=[
            pl.BlockSpec((1, nbH, W * Cin), lambda p, b: (b * (1 - p), 0, 0)),
            pl.BlockSpec((K, W * Cin, rL), lambda p, b: (0, 0, 0)),
            pl.BlockSpec((1, rL), lambda p, b: (0, 0)),
            pl.BlockSpec((2, C1), lambda p, b: (0, 0)),
            pl.BlockSpec((rL, C1), lambda p, b: (0, 0)),
            pl.BlockSpec((C1, rL), lambda p, b: (0, 0)),
            pl.BlockSpec((1, L), lambda p, b: (0, 0)),
            pl.BlockSpec((K, L, L), lambda p, b: (0, 0, 0)),
            pl.BlockSpec((1, L), lambda p, b: (0, 0)),
        ],
        out_specs=pl.BlockSpec((nbH, rL), lambda p, b: (b * p, 0)),
        scratch_shapes=[
            pltpu.VMEM((NB, nbH, rL), f32),   # y1 kept on-chip between the two phases
            pltpu.VMEM((3, C1), f32),         # per-channel sum / sum^2/n / centered M2
            pltpu.VMEM((2, rL), f32),         # per-lane BN scale / shift
        ],
        compiler_params=pltpu.CompilerParams(
            dimension_semantics=("arbitrary", "arbitrary")),
        cost_estimate=cost,
    )(x_rows, r1p, b1_full, bn_par, psum, bcast, alpha_full, r2, b2_full)

    # Kernel output rows are already interleaved (row class lives in the lane axis),
    # so only the NCHW transpose required by the module interface remains.
    out = out_slab.reshape(N, H, r, Wo, out_ch)
    out = jnp.transpose(out, (0, 4, 1, 2, 3)).reshape(N, out_ch, Ho, Wo)
    return out


# --------------------------- parameter init ---------------------------------

def init_params(key, in_ch, out_ch, ksize=3, up_scale=2):
    """Deterministic synthetic init matching the module's parameter shapes."""
    r2 = up_scale ** 2
    C1 = out_ch * r2
    k1, k2, k3, k4, k5 = jax.random.split(key, 5)

    # conv1 weight via ICNR: kaiming-normal sub-kernel, replicated per r^2 group.
    fan_in1 = in_ch * ksize * ksize
    sub = jax.random.normal(k1, (out_ch, in_ch, ksize, ksize),
                            jnp.float32) * jnp.sqrt(2.0 / fan_in1)
    w1 = jnp.repeat(sub, r2, axis=0)                        # (C1, in_ch, k, k) OIHW
    b1 = jnp.zeros((C1,), jnp.float32)                      # module zeroes the bias

    gamma = 1.0 + 0.1 * jax.random.normal(k2, (C1,), jnp.float32)
    beta = 0.1 * jax.random.normal(k3, (C1,), jnp.float32)
    alpha = jnp.full((out_ch,), 0.25, jnp.float32)          # PReLU default

    fan_in2 = out_ch * ksize * ksize
    bound = 1.0 / np.sqrt(fan_in2)
    w2 = jax.random.uniform(k4, (out_ch, out_ch, ksize, ksize), jnp.float32,
                            -bound, bound)
    b2 = jax.random.uniform(k5, (out_ch,), jnp.float32, -bound, bound)

    return dict(w1=w1, b1=b1, gamma=gamma, beta=beta, alpha=alpha, w2=w2, b2=b2)


# ------------------------------ reference -----------------------------------

def reference_forward(x_nchw, p, up_scale=2):
    N, Cin, H, W = x_nchw.shape
    out_ch = p["alpha"].shape[0]
    r = up_scale
    x = jnp.transpose(x_nchw, (0, 2, 3, 1))
    w1 = jnp.transpose(p["w1"], (2, 3, 1, 0))
    y = jax.lax.conv_general_dilated(
        x, w1, (1, 1), "SAME",
        dimension_numbers=("NHWC", "HWIO", "NHWC")) + p["b1"]
    mean = jnp.mean(y, axis=(0, 1, 2))
    var = jnp.var(y, axis=(0, 1, 2))                        # biased, like BN train mode
    y = (y - mean) / jnp.sqrt(var + BN_EPS) * p["gamma"] + p["beta"]
    y = y.reshape(N, H, W, out_ch, r, r)
    y = jnp.transpose(y, (0, 1, 4, 2, 5, 3)).reshape(N, H * r, W * r, out_ch)
    y = jnp.where(y > 0, y, y * p["alpha"])
    w2 = jnp.transpose(p["w2"], (2, 3, 1, 0))
    y = jax.lax.conv_general_dilated(
        y, w2, (1, 1), "SAME",
        dimension_numbers=("NHWC", "HWIO", "NHWC")) + p["b2"]
    return jnp.transpose(y, (0, 3, 1, 2))


# --------------------------------- main --------------------------------------

if __name__ == "__main__":
    key = jax.random.PRNGKey(0)
    kx, kp = jax.random.split(key)

    in_ch, out_ch, ksize, up_scale = 4, 4, 3, 2
    N, H, W = 2, 16, 16
    x = jax.random.normal(kx, (N, in_ch, H, W), jnp.float32)
    params = init_params(kp, in_ch, out_ch, ksize, up_scale)

    fwd = jax.jit(lambda xx, pp: upsample_block_forward(xx, pp, up_scale))
    out = jax.block_until_ready(fwd(x, params))
    assert out.shape == (N, out_ch, H * up_scale, W * up_scale), out.shape

    ref = reference_forward(x, params, up_scale)
    np.testing.assert_allclose(np.asarray(out), np.asarray(ref),
                               rtol=2e-2, atol=2e-2)
    print("KERNEL_OK")
</pallas_src>

<mosaic_0001>
module attributes {stable_mosaic.version = 11 : i64} {
  func.func @kernel(%arg0: i32, %arg1: i32, %arg2: memref<1x32x64xbf16, #tpu.memory_space<vmem>>, %arg3: memref<3x64x256xbf16, #tpu.memory_space<vmem>>, %arg4: memref<1x256xf32, #tpu.memory_space<vmem>>, %arg5: memref<2x16xf32, #tpu.memory_space<vmem>>, %arg6: memref<256x16xf32, #tpu.memory_space<vmem>>, %arg7: memref<16x256xf32, #tpu.memory_space<vmem>>, %arg8: memref<1x128xf32, #tpu.memory_space<vmem>>, %arg9: memref<3x128x128xbf16, #tpu.memory_space<vmem>>, %arg10: memref<1x128xf32, #tpu.memory_space<vmem>>, %arg11: memref<32x256xf32, #tpu.memory_space<vmem>>, %arg12: memref<1x32x256xf32, #tpu.memory_space<vmem>>, %arg13: memref<3x16xf32, #tpu.memory_space<vmem>>, %arg14: memref<2x256xf32, #tpu.memory_space<vmem>>) attributes {dimension_semantics = [#tpu.dimension_semantics<arbitrary>, #tpu.dimension_semantics<arbitrary>], iteration_bounds = array<i64: 2, 1>, scalar_prefetch = 0 : i64, scratch_operands = 3 : i64, tpu.core_type = #tpu.core_type<tc>, window_params = [{transform_indices = @transform_0, window_bounds = array<i64: 1, 32, 64>}, {pipeline_mode = #tpu.pipeline_mode<synchronous>, transform_indices = @transform_1, window_bounds = array<i64: 3, 64, 256>}, {pipeline_mode = #tpu.pipeline_mode<synchronous>, transform_indices = @transform_2, window_bounds = array<i64: 1, 256>}, {pipeline_mode = #tpu.pipeline_mode<synchronous>, transform_indices = @transform_3, window_bounds = array<i64: 2, 16>}, {pipeline_mode = #tpu.pipeline_mode<synchronous>, transform_indices = @transform_4, window_bounds = array<i64: 256, 16>}, {pipeline_mode = #tpu.pipeline_mode<synchronous>, transform_indices = @transform_5, window_bounds = array<i64: 16, 256>}, {pipeline_mode = #tpu.pipeline_mode<synchronous>, transform_indices = @transform_6, window_bounds = array<i64: 1, 128>}, {pipeline_mode = #tpu.pipeline_mode<synchronous>, transform_indices = @transform_7, window_bounds = array<i64: 3, 128, 128>}, {pipeline_mode = #tpu.pipeline_mode<synchronous>, transform_indices = @transform_8, window_bounds = array<i64: 1, 128>}, {transform_indices = @transform_9, window_bounds = array<i64: 32, 256>}]} {
    %0 = tpu.iota {dimensions = array<i32: 0>} : vector<32x1xi32>
    %c16_i32 = arith.constant 16 : i32
    %c0_i32 = arith.constant 0 : i32
    %1 = arith.cmpi eq, %c16_i32, %c0_i32 : i32
    %c1_i32 = arith.constant 1 : i32
    %2 = arith.select %1, %c1_i32, %c16_i32 : i32
    %3 = vector.broadcast %2 : i32 to vector<32x1xi32>
    %4 = arith.remsi %0, %3 : vector<32x1xi32>
    %c0_i32_0 = arith.constant 0 : i32
    %5 = vector.broadcast %c0_i32_0 : i32 to vector<32x1xi32>
    %6 = arith.cmpi ne, %4, %5 : vector<32x1xi32>
    %c0_i32_1 = arith.constant 0 : i32
    %7 = vector.broadcast %c0_i32_1 : i32 to vector<32x1xi32>
    %8 = arith.cmpi slt, %4, %7 : vector<32x1xi32>
    %c0_i32_2 = arith.constant 0 : i32
    %9 = arith.cmpi slt, %2, %c0_i32_2 : i32
    %10 = vector.broadcast %9 : i1 to vector<32x1xi1>
    %11 = vector.broadcast %10 : vector<32x1xi1> to vector<32x1xi1>
    %12 = arith.xori %8, %11 : vector<32x1xi1>
    %13 = arith.andi %12, %6 : vector<32x1xi1>
    %14 = vector.broadcast %2 : i32 to vector<32x1xi32>
    %15 = arith.addi %4, %14 : vector<32x1xi32>
    %16 = arith.select %13, %15, %4 : vector<32x1xi1>, vector<32x1xi32>
    %c0_i32_3 = arith.constant 0 : i32
    %17 = vector.broadcast %c0_i32_3 : i32 to vector<32x1xi32>
    %18 = arith.cmpi ne, %16, %17 : vector<32x1xi32>
    %c16_i32_4 = arith.constant 16 : i32
    %c0_i32_5 = arith.constant 0 : i32
    %19 = arith.cmpi eq, %c16_i32_4, %c0_i32_5 : i32
    %c1_i32_6 = arith.constant 1 : i32
    %20 = arith.select %19, %c1_i32_6, %c16_i32_4 : i32
    %21 = vector.broadcast %20 : i32 to vector<32x1xi32>
    %22 = arith.remsi %0, %21 : vector<32x1xi32>
    %c0_i32_7 = arith.constant 0 : i32
    %23 = vector.broadcast %c0_i32_7 : i32 to vector<32x1xi32>
    %24 = arith.cmpi ne, %22, %23 : vector<32x1xi32>
    %c0_i32_8 = arith.constant 0 : i32
    %25 = vector.broadcast %c0_i32_8 : i32 to vector<32x1xi32>
    %26 = arith.cmpi slt, %22, %25 : vector<32x1xi32>
    %c0_i32_9 = arith.constant 0 : i32
    %27 = arith.cmpi slt, %20, %c0_i32_9 : i32
    %28 = vector.broadcast %27 : i1 to vector<32x1xi1>
    %29 = vector.broadcast %28 : vector<32x1xi1> to vector<32x1xi1>
    %30 = arith.xori %26, %29 : vector<32x1xi1>
    %31 = arith.andi %30, %24 : vector<32x1xi1>
    %32 = vector.broadcast %20 : i32 to vector<32x1xi32>
    %33 = arith.addi %22, %32 : vector<32x1xi32>
    %34 = arith.select %31, %33, %22 : vector<32x1xi1>, vector<32x1xi32>
    %c15_i32 = arith.constant 15 : i32
    %35 = vector.broadcast %c15_i32 : i32 to vector<32x1xi32>
    %36 = arith.cmpi ne, %34, %35 : vector<32x1xi32>
    %c0_i32_10 = arith.constant 0 : i32
    %37 = arith.cmpi eq, %arg0, %c0_i32_10 : i32
    %c0_i32_11 = arith.constant 0 : i32
    %38 = arith.cmpi eq, %arg1, %c0_i32_11 : i32
    %39 = arith.andi %37, %38 : i1
    %40 = arith.extui %39 : i1 to i32
    %c0_i32_12 = arith.constant 0 : i32
    %41 = arith.cmpi ne, %40, %c0_i32_12 : i32
    scf.if %41 {
      %cst = arith.constant 0.000000e+00 : f32
      %53 = vector.broadcast %cst : f32 to vector<3x16xf32>
      %c0 = arith.constant 0 : index
      %c0_20 = arith.constant 0 : index
      %54 = vector.load %arg13[%c0, %c0_20] : memref<3x16xf32, #tpu.memory_space<vmem>>, vector<3x16xf32>
      tpu.vector_store %arg13[%c0, %c0_20], %53 {strides = array<i32>} : memref<3x16xf32, #tpu.memory_space<vmem>>, vector<3x16xf32>,
    } else {
    }
    %c0_i32_13 = arith.constant 0 : i32
    %42 = arith.cmpi eq, %arg0, %c0_i32_13 : i32
    %43 = arith.extui %42 : i1 to i32
    %c0_i32_14 = arith.constant 0 : i32
    %44 = arith.cmpi ne, %43, %c0_i32_14 : i32
    scf.if %44 {
      %c0 = arith.constant 0 : index
      %c0_20 = arith.constant 0 : index
      %c0_21 = arith.constant 0 : index
      %53 = vector.load %arg2[%c0, %c0_20, %c0_21] : memref<1x32x64xbf16, #tpu.memory_space<vmem>>, vector<1x32x64xbf16>
      %54 = vector.shape_cast %53 : vector<1x32x64xbf16> to vector<32x64xbf16>
      %cst = arith.constant 0.000000e+00 : bf16
      %55 = vector.broadcast %cst : bf16 to vector<1x64xbf16>
      %56 = vector.extract_strided_slice %54 {offsets = [0, 0], sizes = [31, 64], strides = [1, 1]} : vector<32x64xbf16> to vector<31x64xbf16>
      %57 = tpu.concatenate %55, %56 in 0 : vector<1x64xbf16>, vector<31x64xbf16> -> vector<32x64xbf16>
      %cst_22 = arith.constant 0.000000e+00 : bf16
      %58 = vector.broadcast %cst_22 : bf16 to vector<32x64xbf16>
      %59 = vector.shape_cast %18 : vector<32x1xi1> to vector<32x1xi1>
      %60 = vector.broadcast %59 : vector<32x1xi1> to vector<32x64xi1>
      %61 = arith.select %60, %57, %58 : vector<32x64xi1>, vector<32x64xbf16>
      %62 = vector.extract_strided_slice %54 {offsets = [1, 0], sizes = [31, 64], strides = [1, 1]} : vector<32x64xbf16> to vector<31x64xbf16>
      %63 = tpu.concatenate %62, %55 in 0 : vector<31x64xbf16>, vector<1x64xbf16> -> vector<32x64xbf16>
      %cst_23 = arith.constant 0.000000e+00 : bf16
      %64 = vector.broadcast %cst_23 : bf16 to vector<32x64xbf16>
      %65 = vector.shape_cast %36 : vector<32x1xi1> to vector<32x1xi1>
      %66 = vector.broadcast %65 : vector<32x1xi1> to vector<32x64xi1>
      %67 = arith.select %66, %63, %64 : vector<32x64xi1>, vector<32x64xbf16>
      %c0_24 = arith.constant 0 : index
      %c0_25 = arith.constant 0 : index
      %c0_26 = arith.constant 0 : index
      %68 = vector.load %arg3[%c0_24, %c0_25, %c0_26] : memref<3x64x256xbf16, #tpu.memory_space<vmem>>, vector<1x64x256xbf16>
      %69 = vector.shape_cast %68 : vector<1x64x256xbf16> to vector<64x256xbf16>
      %cst_27 = arith.constant dense<0.000000e+00> : vector<32x256xf32>
      %70 = tpu.matmul %61, %69, %cst_27 {dimension_numbers = #tpu.dot_dimension_numbers<[1], [0], [0], [1], [0, 0, 1, 1], [], []>} : vector<32x64xbf16>, vector<64x256xbf16>, vector<32x256xf32> -> vector<32x256xf32>
      %c1 = arith.constant 1 : index
      %c0_28 = arith.constant 0 : index
      %c0_29 = arith.constant 0 : index
      %71 = vector.load %arg3[%c1, %c0_28, %c0_29] : memref<3x64x256xbf16, #tpu.memory_space<vmem>>, vector<1x64x256xbf16>
      %72 = vector.shape_cast %71 : vector<1x64x256xbf16> to vector<64x256xbf16>
      %cst_30 = arith.constant dense<0.000000e+00> : vector<32x256xf32>
      %73 = tpu.matmul %54, %72, %cst_30 {dimension_numbers = #tpu.dot_dimension_numbers<[1], [0], [0], [1], [0, 0, 1, 1], [], []>} : vector<32x64xbf16>, vector<64x256xbf16>, vector<32x256xf32> -> vector<32x256xf32>
      %74 = arith.addf %70, %73 : vector<32x256xf32>
      %c2 = arith.constant 2 : index
      %c0_31 = arith.constant 0 : index
      %c0_32 = arith.constant 0 : index
      %75 = vector.load %arg3[%c2, %c0_31, %c0_32] : memref<3x64x256xbf16, #tpu.memory_space<vmem>>, vector<1x64x256xbf16>
      %76 = vector.shape_cast %75 : vector<1x64x256xbf16> to vector<64x256xbf16>
      %cst_33 = arith.constant dense<0.000000e+00> : vector<32x256xf32>
      %77 = tpu.matmul %67, %76, %cst_33 {dimension_numbers = #tpu.dot_dimension_numbers<[1], [0], [0], [1], [0, 0, 1, 1], [], []>} : vector<32x64xbf16>, vector<64x256xbf16>, vector<32x256xf32> -> vector<32x256xf32>
      %78 = arith.addf %74, %77 : vector<32x256xf32>
      %c0_34 = arith.constant 0 : index
      %c0_35 = arith.constant 0 : index
      %79 = vector.load %arg4[%c0_34, %c0_35] : memref<1x256xf32, #tpu.memory_space<vmem>>, vector<1x256xf32>
      %80 = vector.broadcast %79 : vector<1x256xf32> to vector<32x256xf32>
      %81 = arith.addf %78, %80 : vector<32x256xf32>
      %82 = arith.index_cast %arg1 : i32 to index
      %c0_36 = arith.constant 0 : index
      %c0_37 = arith.constant 0 : index
      %83 = vector.load %arg12[%82, %c0_36, %c0_37] : memref<1x32x256xf32, #tpu.memory_space<vmem>>, vector<1x32x256xf32>
      %84 = vector.shape_cast %83 : vector<1x32x256xf32> to vector<32x256xf32>
      %85 = vector.shape_cast %81 : vector<32x256xf32> to vector<1x32x256xf32>
      tpu.vector_store %arg12[%82, %c0_36, %c0_37], %85 {strides = array<i32>} : memref<1x32x256xf32, #tpu.memory_space<vmem>>, vector<1x32x256xf32>,
      %cst_38 = arith.constant dense<0.000000e+00> : vector<256xf32>
      %86 = vector.multi_reduction <add>, %81, %cst_38 [0] : vector<32x256xf32> to vector<256xf32>
      %87 = vector.shape_cast %86 : vector<256xf32> to vector<1x256xf32>
      %c0_39 = arith.constant 0 : index
      %c0_40 = arith.constant 0 : index
      %88 = vector.load %arg6[%c0_39, %c0_40] : memref<256x16xf32, #tpu.memory_space<vmem>>, vector<256x16xf32>
      %cst_41 = arith.constant dense<0.000000e+00> : vector<1x16xf32>
      %89 = tpu.matmul %87, %88, %cst_41 {dimension_numbers = #tpu.dot_dimension_numbers<[1], [0], [0], [1], [0, 0, 1, 1], [], []>} : vector<1x256xf32>, vector<256x16xf32>, vector<1x16xf32> -> vector<1x16xf32>
      %cst_42 = arith.constant 0.001953125 : f32
      %90 = vector.broadcast %cst_42 : f32 to vector<1x16xf32>
      %91 = arith.mulf %89, %90 : vector<1x16xf32>
      %c0_43 = arith.constant 0 : index
      %c0_44 = arith.constant 0 : index
      %92 = vector.load %arg7[%c0_43, %c0_44] : memref<16x256xf32, #tpu.memory_space<vmem>>, vector<16x256xf32>
      %cst_45 = arith.constant dense<0.000000e+00> : vector<1x256xf32>
      %93 = tpu.matmul %91, %92, %cst_45 {dimension_numbers = #tpu.dot_dimension_numbers<[1], [0], [0], [1], [0, 0, 1, 1], [], []>} : vector<1x16xf32>, vector<16x256xf32>, vector<1x256xf32> -> vector<1x256xf32>
      %94 = vector.broadcast %93 : vector<1x256xf32> to vector<32x256xf32>
      %95 = arith.subf %81, %94 : vector<32x256xf32>
      %96 = arith.mulf %95, %95 : vector<32x256xf32>
      %cst_46 = arith.constant dense<0.000000e+00> : vector<256xf32>
      %97 = vector.multi_reduction <add>, %96, %cst_46 [0] : vector<32x256xf32> to vector<256xf32>
      %98 = vector.shape_cast %97 : vector<256xf32> to vector<1x256xf32>
      %c0_47 = arith.constant 0 : index
      %c0_48 = arith.constant 0 : index
      %99 = vector.load %arg6[%c0_47, %c0_48] : memref<256x16xf32, #tpu.memory_space<vmem>>, vector<256x16xf32>
      %cst_49 = arith.constant dense<0.000000e+00> : vector<1x16xf32>
      %100 = tpu.matmul %98, %99, %cst_49 {dimension_numbers = #tpu.dot_dimension_numbers<[1], [0], [0], [1], [0, 0, 1, 1], [], []>} : vector<1x256xf32>, vector<256x16xf32>, vector<1x16xf32> -> vector<1x16xf32>
      %c0_50 = arith.constant 0 : index
      %c0_51 = arith.constant 0 : index
      %101 = vector.load %arg13[%c0_50, %c0_51] : memref<3x16xf32, #tpu.memory_space<vmem>>, vector<3x16xf32>
      %102 = arith.mulf %89, %89 : vector<1x16xf32>
      %cst_52 = arith.constant 0.001953125 : f32
      %103 = vector.broadcast %cst_52 : f32 to vector<1x16xf32>
      %104 = arith.mulf %102, %103 : vector<1x16xf32>
      %105 = tpu.concatenate %89, %104, %100 in 0 : vector<1x16xf32>, vector<1x16xf32>, vector<1x16xf32> -> vector<3x16xf32>
      %106 = arith.addf %101, %105 : vector<3x16xf32>
      %c0_53 = arith.constant 0 : index
      %c0_54 = arith.constant 0 : index
      %107 = vector.load %arg13[%c0_53, %c0_54] : memref<3x16xf32, #tpu.memory_space<vmem>>, vector<3x16xf32>
      tpu.vector_store %arg13[%c0_53, %c0_54], %106 {strides = array<i32>} : memref<3x16xf32, #tpu.memory_space<vmem>>, vector<3x16xf32>,
    } else {
    }
    %c1_i32_15 = arith.constant 1 : i32
    %45 = arith.cmpi eq, %arg0, %c1_i32_15 : i32
    %c0_i32_16 = arith.constant 0 : i32
    %46 = arith.cmpi eq, %arg1, %c0_i32_16 : i32
    %47 = arith.andi %45, %46 : i1
    %48 = arith.extui %47 : i1 to i32
    %c0_i32_17 = arith.constant 0 : i32
    %49 = arith.cmpi ne, %48, %c0_i32_17 : i32
    scf.if %49 {
      %c0 = arith.constant 0 : index
      %c0_20 = arith.constant 0 : index
      %53 = vector.load %arg13[%c0, %c0_20] : memref<3x16xf32, #tpu.memory_space<vmem>>, vector<1x16xf32>
      %c1 = arith.constant 1 : index
      %c0_21 = arith.constant 0 : index
      %54 = vector.load %arg13[%c1, %c0_21] : memref<3x16xf32, #tpu.memory_space<vmem>>, vector<1x16xf32>
      %c2 = arith.constant 2 : index
      %c0_22 = arith.constant 0 : index
      %55 = vector.load %arg13[%c2, %c0_22] : memref<3x16xf32, #tpu.memory_space<vmem>>, vector<1x16xf32>
      %cst = arith.constant 0.001953125 : f32
      %56 = vector.broadcast %cst : f32 to vector<1x16xf32>
      %57 = arith.mulf %53, %56 : vector<1x16xf32>
      %58 = arith.addf %55, %54 : vector<1x16xf32>
      %59 = arith.mulf %53, %57 : vector<1x16xf32>
      %60 = arith.subf %58, %59 : vector<1x16xf32>
      %cst_23 = arith.constant 0.001953125 : f32
      %61 = vector.broadcast %cst_23 : f32 to vector<1x16xf32>
      %62 = arith.mulf %60, %61 : vector<1x16xf32>
      %c0_24 = arith.constant 0 : index
      %c0_25 = arith.constant 0 : index
      %63 = vector.load %arg5[%c0_24, %c0_25] : memref<2x16xf32, #tpu.memory_space<vmem>>, vector<1x16xf32>
      %cst_26 = arith.constant 9.99999974E-6 : f32
      %64 = vector.broadcast %cst_26 : f32 to vector<1x16xf32>
      %65 = arith.addf %62, %64 : vector<1x16xf32>
      %66 = math.rsqrt %65 : vector<1x16xf32>
      %67 = arith.mulf %63, %66 : vector<1x16xf32>
      %c1_27 = arith.constant 1 : index
      %c0_28 = arith.constant 0 : index
      %68 = vector.load %arg5[%c1_27, %c0_28] : memref<2x16xf32, #tpu.memory_space<vmem>>, vector<1x16xf32>
      %69 = arith.mulf %57, %67 : vector<1x16xf32>
      %70 = arith.subf %68, %69 : vector<1x16xf32>
      %71 = tpu.concatenate %67, %70 in 0 : vector<1x16xf32>, vector<1x16xf32> -> vector<2x16xf32>
      %c0_29 = arith.constant 0 : index
      %c0_30 = arith.constant 0 : index
      %72 = vector.load %arg7[%c0_29, %c0_30] : memref<16x256xf32, #tpu.memory_space<vmem>>, vector<16x256xf32>
      %cst_31 = arith.constant dense<0.000000e+00> : vector<2x256xf32>
      %73 = tpu.matmul %71, %72, %cst_31 {dimension_numbers = #tpu.dot_dimension_numbers<[1], [0], [0], [1], [0, 0, 1, 1], [], []>} : vector<2x16xf32>, vector<16x256xf32>, vector<2x256xf32> -> vector<2x256xf32>
      %c0_32 = arith.constant 0 : index
      %c0_33 = arith.constant 0 : index
      %74 = vector.load %arg14[%c0_32, %c0_33] : memref<2x256xf32, #tpu.memory_space<vmem>>, vector<2x256xf32>
      tpu.vector_store %arg14[%c0_32, %c0_33], %73 {strides = array<i32>} : memref<2x256xf32, #tpu.memory_space<vmem>>, vector<2x256xf32>,
    } else {
    }
    %c1_i32_18 = arith.constant 1 : i32
    %50 = arith.cmpi eq, %arg0, %c1_i32_18 : i32
    %51 = arith.extui %50 : i1 to i32
    %c0_i32_19 = arith.constant 0 : i32
    %52 = arith.cmpi ne, %51, %c0_i32_19 : i32
    scf.if %52 {
      %53 = arith.index_cast %arg1 : i32 to index
      %c0 = arith.constant 0 : index
      %c0_20 = arith.constant 0 : index
      %54 = vector.load %arg12[%53, %c0, %c0_20] : memref<1x32x256xf32, #tpu.memory_space<vmem>>, vector<1x32x256xf32>
      %55 = vector.shape_cast %54 : vector<1x32x256xf32> to vector<32x256xf32>
      %c0_21 = arith.constant 0 : index
      %c0_22 = arith.constant 0 : index
      %56 = vector.load %arg14[%c0_21, %c0_22] : memref<2x256xf32, #tpu.memory_space<vmem>>, vector<1x256xf32>
      %57 = vector.broadcast %56 : vector<1x256xf32> to vector<32x256xf32>
      %58 = arith.mulf %55, %57 : vector<32x256xf32>
      %c1 = arith.constant 1 : index
      %c0_23 = arith.constant 0 : index
      %59 = vector.load %arg14[%c1, %c0_23] : memref<2x256xf32, #tpu.memory_space<vmem>>, vector<1x256xf32>
      %60 = vector.broadcast %59 : vector<1x256xf32> to vector<32x256xf32>
      %61 = arith.addf %58, %60 : vector<32x256xf32>
      %c0_24 = arith.constant 0 : index
      %c0_25 = arith.constant 0 : index
      %62 = vector.load %arg8[%c0_24, %c0_25] : memref<1x128xf32, #tpu.memory_space<vmem>>, vector<1x128xf32>
      %63 = vector.extract_strided_slice %61 {offsets = [0, 0], sizes = [32, 128], strides = [1, 1]} : vector<32x256xf32> to vector<32x128xf32>
      %cst = arith.constant 0.000000e+00 : f32
      %64 = vector.broadcast %cst : f32 to vector<32x128xf32>
      %65 = arith.cmpf ogt, %63, %64 : vector<32x128xf32>
      %66 = vector.broadcast %62 : vector<1x128xf32> to vector<32x128xf32>
      %67 = arith.mulf %63, %66 : vector<32x128xf32>
      %68 = arith.select %65, %63, %67 : vector<32x128xi1>, vector<32x128xf32>
      %69 = arith.truncf %68 : vector<32x128xf32> to vector<32x128xbf16>
      %70 = vector.extract_strided_slice %61 {offsets = [0, 128], sizes = [32, 128], strides = [1, 1]} : vector<32x256xf32> to vector<32x128xf32>
      %cst_26 = arith.constant 0.000000e+00 : f32
      %71 = vector.broadcast %cst_26 : f32 to vector<32x128xf32>
      %72 = arith.cmpf ogt, %70, %71 : vector<32x128xf32>
      %73 = vector.broadcast %62 : vector<1x128xf32> to vector<32x128xf32>
      %74 = arith.mulf %70, %73 : vector<32x128xf32>
      %75 = arith.select %72, %70, %74 : vector<32x128xi1>, vector<32x128xf32>
      %76 = arith.truncf %75 : vector<32x128xf32> to vector<32x128xbf16>
      %cst_27 = arith.constant 0.000000e+00 : bf16
      %77 = vector.broadcast %cst_27 : bf16 to vector<1x128xbf16>
      %78 = vector.extract_strided_slice %76 {offsets = [0, 0], sizes = [31, 128], strides = [1, 1]} : vector<32x128xbf16> to vector<31x128xbf16>
      %79 = tpu.concatenate %77, %78 in 0 : vector<1x128xbf16>, vector<31x128xbf16> -> vector<32x128xbf16>
      %cst_28 = arith.constant 0.000000e+00 : bf16
      %80 = vector.broadcast %cst_28 : bf16 to vector<32x128xbf16>
      %81 = vector.shape_cast %18 : vector<32x1xi1> to vector<32x1xi1>
      %82 = vector.broadcast %81 : vector<32x1xi1> to vector<32x128xi1>
      %83 = arith.select %82, %79, %80 : vector<32x128xi1>, vector<32x128xbf16>
      %c0_29 = arith.constant 0 : index
      %c0_30 = arith.constant 0 : index
      %c0_31 = arith.constant 0 : index
      %84 = vector.load %arg9[%c0_29, %c0_30, %c0_31] : memref<3x128x128xbf16, #tpu.memory_space<vmem>>, vector<1x128x128xbf16>
      %85 = vector.shape_cast %84 : vector<1x128x128xbf16> to vector<128x128xbf16>
      %cst_32 = arith.constant dense<0.000000e+00> : vector<32x128xf32>
      %86 = tpu.matmul %83, %85, %cst_32 {dimension_numbers = #tpu.dot_dimension_numbers<[1], [0], [0], [1], [0, 0, 1, 1], [], []>} : vector<32x128xbf16>, vector<128x128xbf16>, vector<32x128xf32> -> vector<32x128xf32>
      %c1_33 = arith.constant 1 : index
      %c0_34 = arith.constant 0 : index
      %c0_35 = arith.constant 0 : index
      %87 = vector.load %arg9[%c1_33, %c0_34, %c0_35] : memref<3x128x128xbf16, #tpu.memory_space<vmem>>, vector<1x128x128xbf16>
      %88 = vector.shape_cast %87 : vector<1x128x128xbf16> to vector<128x128xbf16>
      %cst_36 = arith.constant dense<0.000000e+00> : vector<32x128xf32>
      %89 = tpu.matmul %69, %88, %cst_36 {dimension_numbers = #tpu.dot_dimension_numbers<[1], [0], [0], [1], [0, 0, 1, 1], [], []>} : vector<32x128xbf16>, vector<128x128xbf16>, vector<32x128xf32> -> vector<32x128xf32>
      %90 = arith.addf %86, %89 : vector<32x128xf32>
      %c2 = arith.constant 2 : index
      %c0_37 = arith.constant 0 : index
      %c0_38 = arith.constant 0 : index
      %91 = vector.load %arg9[%c2, %c0_37, %c0_38] : memref<3x128x128xbf16, #tpu.memory_space<vmem>>, vector<1x128x128xbf16>
      %92 = vector.shape_cast %91 : vector<1x128x128xbf16> to vector<128x128xbf16>
      %cst_39 = arith.constant dense<0.000000e+00> : vector<32x128xf32>
      %93 = tpu.matmul %76, %92, %cst_39 {dimension_numbers = #tpu.dot_dimension_numbers<[1], [0], [0], [1], [0, 0, 1, 1], [], []>} : vector<32x128xbf16>, vector<128x128xbf16>, vector<32x128xf32> -> vector<32x128xf32>
      %94 = arith.addf %90, %93 : vector<32x128xf32>
      %c0_40 = arith.constant 0 : index
      %c0_41 = arith.constant 0 : index
      %95 = vector.load %arg10[%c0_40, %c0_41] : memref<1x128xf32, #tpu.memory_space<vmem>>, vector<1x128xf32>
      %96 = vector.broadcast %95 : vector<1x128xf32> to vector<32x128xf32>
      %97 = arith.addf %94, %96 : vector<32x128xf32>
      %c0_42 = arith.constant 0 : index
      %c0_43 = arith.constant 0 : index
      %98 = vector.load %arg11[%c0_42, %c0_43] : memref<32x256xf32, #tpu.memory_space<vmem>>, vector<32x128xf32>
      tpu.vector_store %arg11[%c0_42, %c0_43], %97 {strides = array<i32>} : memref<32x256xf32, #tpu.memory_space<vmem>>, vector<32x128xf32>,
      %99 = vector.extract_strided_slice %69 {offsets = [1, 0], sizes = [31, 128], strides = [1, 1]} : vector<32x128xbf16> to vector<31x128xbf16>
      %100 = tpu.concatenate %99, %77 in 0 : vector<31x128xbf16>, vector<1x128xbf16> -> vector<32x128xbf16>
      %cst_44 = arith.constant 0.000000e+00 : bf16
      %101 = vector.broadcast %cst_44 : bf16 to vector<32x128xbf16>
      %102 = vector.shape_cast %36 : vector<32x1xi1> to vector<32x1xi1>
      %103 = vector.broadcast %102 : vector<32x1xi1> to vector<32x128xi1>
      %104 = arith.select %103, %100, %101 : vector<32x128xi1>, vector<32x128xbf16>
      %c0_45 = arith.constant 0 : index
      %c0_46 = arith.constant 0 : index
      %c0_47 = arith.constant 0 : index
      %105 = vector.load %arg9[%c0_45, %c0_46, %c0_47] : memref<3x128x128xbf16, #tpu.memory_space<vmem>>, vector<1x128x128xbf16>
      %106 = vector.shape_cast %105 : vector<1x128x128xbf16> to vector<128x128xbf16>
      %cst_48 = arith.constant dense<0.000000e+00> : vector<32x128xf32>
      %107 = tpu.matmul %69, %106, %cst_48 {dimension_numbers = #tpu.dot_dimension_numbers<[1], [0], [0], [1], [0, 0, 1, 1], [], []>} : vector<32x128xbf16>, vector<128x128xbf16>, vector<32x128xf32> -> vector<32x128xf32>
      %c1_49 = arith.constant 1 : index
      %c0_50 = arith.constant 0 : index
      %c0_51 = arith.constant 0 : index
      %108 = vector.load %arg9[%c1_49, %c0_50, %c0_51] : memref<3x128x128xbf16, #tpu.memory_space<vmem>>, vector<1x128x128xbf16>
      %109 = vector.shape_cast %108 : vector<1x128x128xbf16> to vector<128x128xbf16>
      %cst_52 = arith.constant dense<0.000000e+00> : vector<32x128xf32>
      %110 = tpu.matmul %76, %109, %cst_52 {dimension_numbers = #tpu.dot_dimension_numbers<[1], [0], [0], [1], [0, 0, 1, 1], [], []>} : vector<32x128xbf16>, vector<128x128xbf16>, vector<32x128xf32> -> vector<32x128xf32>
      %111 = arith.addf %107, %110 : vector<32x128xf32>
      %c2_53 = arith.constant 2 : index
      %c0_54 = arith.constant 0 : index
      %c0_55 = arith.constant 0 : index
      %112 = vector.load %arg9[%c2_53, %c0_54, %c0_55] : memref<3x128x128xbf16, #tpu.memory_space<vmem>>, vector<1x128x128xbf16>
      %113 = vector.shape_cast %112 : vector<1x128x128xbf16> to vector<128x128xbf16>
      %cst_56 = arith.constant dense<0.000000e+00> : vector<32x128xf32>
      %114 = tpu.matmul %104, %113, %cst_56 {dimension_numbers = #tpu.dot_dimension_numbers<[1], [0], [0], [1], [0, 0, 1, 1], [], []>} : vector<32x128xbf16>, vector<128x128xbf16>, vector<32x128xf32> -> vector<32x128xf32>
      %115 = arith.addf %111, %114 : vector<32x128xf32>
      %c0_57 = arith.constant 0 : index
      %c0_58 = arith.constant 0 : index
      %116 = vector.load %arg10[%c0_57, %c0_58] : memref<1x128xf32, #tpu.memory_space<vmem>>, vector<1x128xf32>
      %117 = vector.broadcast %116 : vector<1x128xf32> to vector<32x128xf32>
      %118 = arith.addf %115, %117 : vector<32x128xf32>
      %c0_59 = arith.constant 0 : index
      %c128 = arith.constant 128 : index
      %119 = vector.load %arg11[%c0_59, %c128] : memref<32x256xf32, #tpu.memory_space<vmem>>, vector<32x128xf32>
      tpu.vector_store %arg11[%c0_59, %c128], %118 {strides = array<i32>} : memref<32x256xf32, #tpu.memory_space<vmem>>, vector<32x128xf32>,
    } else {
    }
    return
  }
  func.func @transform_0(%arg0: i32, %arg1: i32) -> (i32, i32, i32) {
    %c1_i32 = arith.constant 1 : i32
    %0 = arith.subi %c1_i32, %arg0 : i32
    %1 = arith.muli %arg1, %0 : i32
    %c0_i32 = arith.constant 0 : i32
    %c0_i32_0 = arith.constant 0 : i32
    %c0_i32_1 = arith.constant 0 : i32
    return %1, %c0_i32, %c0_i32_0 : i32, i32, i32
  }
  func.func @transform_1(%arg0: i32, %arg1: i32) -> (i32, i32, i32) {
    %c0_i32 = arith.constant 0 : i32
    %c0_i32_0 = arith.constant 0 : i32
    %c0_i32_1 = arith.constant 0 : i32
    %c0_i32_2 = arith.constant 0 : i32
    return %c0_i32, %c0_i32_0, %c0_i32_1 : i32, i32, i32
  }
  func.func @transform_2(%arg0: i32, %arg1: i32) -> (i32, i32) {
    %c0_i32 = arith.constant 0 : i32
    %c0_i32_0 = arith.constant 0 : i32
    %c0_i32_1 = arith.constant 0 : i32
    return %c0_i32, %c0_i32_0 : i32, i32
  }
  func.func @transform_3(%arg0: i32, %arg1: i32) -> (i32, i32) {
    %c0_i32 = arith.constant 0 : i32
    %c0_i32_0 = arith.constant 0 : i32
    %c0_i32_1 = arith.constant 0 : i32
    return %c0_i32, %c0_i32_0 : i32, i32
  }
  func.func @transform_4(%arg0: i32, %arg1: i32) -> (i32, i32) {
    %c0_i32 = arith.constant 0 : i32
    %c0_i32_0 = arith.constant 0 : i32
    %c0_i32_1 = arith.constant 0 : i32
    return %c0_i32, %c0_i32_0 : i32, i32
  }
  func.func @transform_5(%arg0: i32, %arg1: i32) -> (i32, i32) {
    %c0_i32 = arith.constant 0 : i32
    %c0_i32_0 = arith.constant 0 : i32
    %c0_i32_1 = arith.constant 0 : i32
    return %c0_i32, %c0_i32_0 : i32, i32
  }
  func.func @transform_6(%arg0: i32, %arg1: i32) -> (i32, i32) {
    %c0_i32 = arith.constant 0 : i32
    %c0_i32_0 = arith.constant 0 : i32
    %c0_i32_1 = arith.constant 0 : i32
    return %c0_i32, %c0_i32_0 : i32, i32
  }
  func.func @transform_7(%arg0: i32, %arg1: i32) -> (i32, i32, i32) {
    %c0_i32 = arith.constant 0 : i32
    %c0_i32_0 = arith.constant 0 : i32
    %c0_i32_1 = arith.constant 0 : i32
    %c0_i32_2 = arith.constant 0 : i32
    return %c0_i32, %c0_i32_0, %c0_i32_1 : i32, i32, i32
  }
  func.func @transform_8(%arg0: i32, %arg1: i32) -> (i32, i32) {
    %c0_i32 = arith.constant 0 : i32
    %c0_i32_0 = arith.constant 0 : i32
    %c0_i32_1 = arith.constant 0 : i32
    return %c0_i32, %c0_i32_0 : i32, i32
  }
  func.func @transform_9(%arg0: i32, %arg1: i32) -> (i32, i32) {
    %0 = arith.muli %arg1, %arg0 : i32
    %c0_i32 = arith.constant 0 : i32
    %c0_i32_0 = arith.constant 0 : i32
    return %0, %c0_i32 : i32, i32
  }
}

</mosaic_0001>

<llo_original>
// kernel: tile.18
$region0: #{tile.18}
  #allocation0 [shape = 's32[1]{0}', space=sflag, size = 0x4, scoped, tag = 'scoped memory for tile.18']
  %s0 = inlined_call_operand.vmem [shape: f32[16], index: 0, kind: input, shape index: {}]
  %s1 = inlined_call_operand.vmem [shape: f32[16,16], index: 1, kind: output, shape index: {}]
  // Predicated region
  $region2: #{tile.18} parent=0 // pred_check
    _
  $region3: #{tile.18} parent=0 // pred_check_branch
    %3 = sbr.rel (0) target = $region5
  $region4: #{tile.18} parent=0 // pred_region
    _
  $region5: #{tile.18} parent=0 // pred_fallthru
    _
  %v4 = vld [vmem:[%s0] ss:$0 sm:$0xff]
  %5 = vst [vmem:[%s1] sm:$0xff] %v4
  %s6 = scalar_lea.vmem %s1, 8
  %7 = vst [vmem:[%s6] sm:$0xff] %v4

// kernel: tile.19
$region0: #{tile.19}
  %s0 = inlined_call_operand.vmem [shape: f32[16,16], index: 0, kind: input, shape index: {}]
  %s1 = inlined_call_operand.vmem [shape: f32[256], index: 1, kind: output, shape index: {}]
  $region1: #{tile.19} parent=0
    #allocation0 [shape = 'u8[4096]{0}', space=vmem, size = 0x1000, scoped, tag = 'scoped mem for output reshape']
    %s2 = smov 3
    %v3 = vld [vmem:[%s0] ss:$8 sm:%s2]
    %vm4 = vcmask 130048
    %5 = vst.msk [vmem:[#allocation0] sm:$0x3] %vm4, %v3
    %s6 = scalar_lea.vmem %s0, 7
    %s7 = smov 3
    %v8 = vld [vmem:[%s6] ss:$8 sm:%s7]
    %9 = vrot.lane.b32.xlu0 %v8, 112
    %v10 = vpop.permute.xlu0 %9
    %vm11 = vcmask 1048448
    %12 = vst.msk [vmem:[#allocation0] sm:$0x3] %vm11, %v10
    %s13 = scalar_lea.vmem %s0, 6
    %s14 = smov 3
    %v15 = vld [vmem:[%s13] ss:$8 sm:%s14]
    %16 = vrot.lane.b32.xlu0 %v15, 96
    %v17 = vpop.permute.xlu0 %16
    %vm18 = vcmask 917248
    %19 = vst.msk [vmem:[#allocation0] sm:$0x3] %vm18, %v17
    %s20 = scalar_lea.vmem %s0, 5
    %s21 = smov 3
    %v22 = vld [vmem:[%s20] ss:$8 sm:%s21]
    %23 = vrot.lane.b32.xlu0 %v22, 80
    %v24 = vpop.permute.xlu0 %23
    %vm25 = vcmask 786048
    %26 = vst.msk [vmem:[#allocation0] sm:$0x3] %vm25, %v24
    %s27 = scalar_lea.vmem %s0, 4
    %s28 = smov 3
    %v29 = vld [vmem:[%s27] ss:$8 sm:%s28]
    %30 = vrot.lane.b32.xlu0 %v29, 64
    %v31 = vpop.permute.xlu0 %30
    %vm32 = vcmask 654848
    %33 = vst.msk [vmem:[#allocation0] sm:$0x3] %vm32, %v31
    %s34 = scalar_lea.vmem %s0, 3
    %s35 = smov 3
    %v36 = vld [vmem:[%s34] ss:$8 sm:%s35]
    %37 = vrot.lane.b32.xlu0 %v36, 48
    %v38 = vpop.permute.xlu0 %37
    %vm39 = vcmask 523648
    %40 = vst.msk [vmem:[#allocation0] sm:$0x3] %vm39, %v38
    %s41 = scalar_lea.vmem %s0, 2
    %s42 = smov 3
    %v43 = vld [vmem:[%s41] ss:$8 sm:%s42]
    %44 = vrot.lane.b32.xlu0 %v43, 32
    %v45 = vpop.permute.xlu0 %44
    %vm46 = vcmask 392448
    %47 = vst.msk [vmem:[#allocation0] sm:$0x3] %vm46, %v45
    %s48 = scalar_lea.vmem %s0, 1
    %s49 = smov 3
    %v50 = vld [vmem:[%s48] ss:$8 sm:%s49]
    %51 = vrot.lane.b32.xlu0 %v50, 16
    %v52 = vpop.permute.xlu0 %51
    %vm53 = vcmask 261248
    %54 = vst.msk [vmem:[#allocation0] sm:$0x3] %vm53, %v52
    %s56 = ssub.s32 4, 1
    %v57 = vld [vmem:[#allocation0] sm:%s56]
    %s59 = ssub.s32 4, 1
    %60 = vst [vmem:[%s1] sm:%s59] %v57

// kernel: tile.23
$region0: #{tile.23}
  #allocation0 [shape = 's32[1]{0}', space=sflag, size = 0x4, scoped, tag = 'scoped memory for tile.23']
  %s0 = inlined_call_operand.vmem [shape: f32[4], index: 0, kind: input, shape index: {}]
  %s1 = inlined_call_operand.vmem [shape: f32[32,4], index: 1, kind: output, shape index: {}]
  // Predicated region
  $region2: #{tile.23} parent=0 // pred_check
    _
  $region3: #{tile.23} parent=0 // pred_check_branch
    %3 = sbr.rel (0) target = $region5
  $region4: #{tile.23} parent=0 // pred_region
    _
  $region5: #{tile.23} parent=0 // pred_fallthru
    _
  %v4 = vld [vmem:[%s0] ss:$0 sm:$0xff]
  %5 = vst [vmem:[%s1] sm:$0xff] %v4
  %s6 = scalar_lea.vmem %s1, 8
  %7 = vst [vmem:[%s6] sm:$0xff] %v4
  %s8 = scalar_lea.vmem %s1, 16
  %9 = vst [vmem:[%s8] sm:$0xff] %v4
  %s10 = scalar_lea.vmem %s1, 24
  %11 = vst [vmem:[%s10] sm:$0xff] %v4

// kernel: tile.24
$region0: #{tile.24}
  %s0 = inlined_call_operand.vmem [shape: f32[32,4], index: 0, kind: input, shape index: {}]
  %s1 = inlined_call_operand.vmem [shape: f32[1,128], index: 1, kind: output, shape index: {}]
  $region1: #{tile.24} parent=0
    #allocation0 [shape = 'u8[4096]{0}', space=vmem, size = 0x1000, scoped, tag = 'scoped mem for output reshape']
    %v2 = vld [vmem:[%s0] sm:$0x1]
    %vm3 = vcmask 31744
    %4 = vst.msk [vmem:[#allocation0] sm:$0x1] %vm3, %v2
    %s5 = scalar_lea.vmem %s0, 31
    %v6 = vld [vmem:[%s5] sm:$0x1]
    %7 = vrot.lane.b32.xlu0 %v6, 124
    %v8 = vpop.permute.xlu0 %7
    %vm9 = vcmask 1048544
    %10 = vst.msk [vmem:[#allocation0] sm:$0x1] %vm9, %v8
    %s11 = scalar_lea.vmem %s0, 30
    %v12 = vld [vmem:[%s11] sm:$0x1]
    %13 = vrot.lane.b32.xlu0 %v12, 120
    %v14 = vpop.permute.xlu0 %13
    %vm15 = vcmask 1015744
    %16 = vst.msk [vmem:[#allocation0] sm:$0x1] %vm15, %v14
    %s17 = scalar_lea.vmem %s0, 29
    %v18 = vld [vmem:[%s17] sm:$0x1]
    %19 = vrot.lane.b32.xlu0 %v18, 116
    %v20 = vpop.permute.xlu0 %19
    %vm21 = vcmask 982944
    %22 = vst.msk [vmem:[#allocation0] sm:$0x1] %vm21, %v20
    %s23 = scalar_lea.vmem %s0, 28
    %v24 = vld [vmem:[%s23] sm:$0x1]
    %25 = vrot.lane.b32.xlu0 %v24, 112
    %v26 = vpop.permute.xlu0 %25
    %vm27 = vcmask 950144
    %28 = vst.msk [vmem:[#allocation0] sm:$0x1] %vm27, %v26
    %s29 = scalar_lea.vmem %s0, 27
    %v30 = vld [vmem:[%s29] sm:$0x1]
    %31 = vrot.lane.b32.xlu0 %v30, 108
    %v32 = vpop.permute.xlu0 %31
    %vm33 = vcmask 917344
    %34 = vst.msk [vmem:[#allocation0] sm:$0x1] %vm33, %v32
    %s35 = scalar_lea.vmem %s0, 26
    %v36 = vld [vmem:[%s35] sm:$0x1]
    %37 = vrot.lane.b32.xlu0 %v36, 104
    %v38 = vpop.permute.xlu0 %37
    %vm39 = vcmask 884544
    %40 = vst.msk [vmem:[#allocation0] sm:$0x1] %vm39, %v38
    %s41 = scalar_lea.vmem %s0, 25
    %v42 = vld [vmem:[%s41] sm:$0x1]
    %43 = vrot.lane.b32.xlu0 %v42, 100
    %v44 = vpop.permute.xlu0 %43
    %vm45 = vcmask 851744
    %46 = vst.msk [vmem:[#allocation0] sm:$0x1] %vm45, %v44
    %s47 = scalar_lea.vmem %s0, 24
    %v48 = vld [vmem:[%s47] sm:$0x1]
    %49 = vrot.lane.b32.xlu0 %v48, 96
    %v50 = vpop.permute.xlu0 %49
    %vm51 = vcmask 818944
    %52 = vst.msk [vmem:[#allocation0] sm:$0x1] %vm51, %v50
    %s53 = scalar_lea.vmem %s0, 23
    %v54 = vld [vmem:[%s53] sm:$0x1]
    %55 = vrot.lane.b32.xlu0 %v54, 92
    %v56 = vpop.permute.xlu0 %55
    %vm57 = vcmask 786144
    %58 = vst.msk [vmem:[#allocation0] sm:$0x1] %vm57, %v56
    %s59 = scalar_lea.vmem %s0, 22
    %v60 = vld [vmem:[%s59] sm:$0x1]
    %61 = vrot.lane.b32.xlu0 %v60, 88
    %v62 = vpop.permute.xlu0 %61
    %vm63 = vcmask 753344
    %64 = vst.msk [vmem:[#allocation0] sm:$0x1] %vm63, %v62
    %s65 = scalar_lea.vmem %s0, 21
    %v66 = vld [vmem:[%s65] sm:$0x1]
    %67 = vrot.lane.b32.xlu0 %v66, 84
    %v68 = vpop.permute.xlu0 %67
    %vm69 = vcmask 720544
    %70 = vst.msk [vmem:[#allocation0] sm:$0x1] %vm69, %v68
    %s71 = scalar_lea.vmem %s0, 20
    %v72 = vld [vmem:[%s71] sm:$0x1]
    %73 = vrot.lane.b32.xlu0 %v72, 80
    %v74 = vpop.permute.xlu0 %73
    %vm75 = vcmask 687744
    %76 = vst.msk [vmem:[#allocation0] sm:$0x1] %vm75, %v74
    %s77 = scalar_lea.vmem %s0, 19
    %v78 = vld [vmem:[%s77] sm:$0x1]
    %79 = vrot.lane.b32.xlu0 %v78, 76
    %v80 = vpop.permute.xlu0 %79
    %vm81 = vcmask 654944
    %82 = vst.msk [vmem:[#allocation0] sm:$0x1] %vm81, %v80
    %s83 = scalar_lea.vmem %s0, 18
    %v84 = vld [vmem:[%s83] sm:$0x1]
    %85 = vrot.lane.b32.xlu0 %v84, 72
    %v86 = vpop.permute.xlu0 %85
    %vm87 = vcmask 622144
    %88 = vst.msk [vmem:[#allocation0] sm:$0x1] %vm87, %v86
    %s89 = scalar_lea.vmem %s0, 17
    %v90 = vld [vmem:[%s89] sm:$0x1]
    %91 = vrot.lane.b32.xlu0 %v90, 68
    %v92 = vpop.permute.xlu0 %91
    %vm93 = vcmask 589344
    %94 = vst.msk [vmem:[#allocation0] sm:$0x1] %vm93, %v92
    %s95 = scalar_lea.vmem %s0, 16
    %v96 = vld [vmem:[%s95] sm:$0x1]
    %97 = vrot.lane.b32.xlu0 %v96, 64
    %v98 = vpop.permute.xlu0 %97
    %vm99 = vcmask 556544
    %100 = vst.msk [vmem:[#allocation0] sm:$0x1] %vm99, %v98
    %s101 = scalar_lea.vmem %s0, 15
    %v102 = vld [vmem:[%s101] sm:$0x1]
    %103 = vrot.lane.b32.xlu0 %v102, 60
    %v104 = vpop.permute.xlu0 %103
    %vm105 = vcmask 523744
    %106 = vst.msk [vmem:[#allocation0] sm:$0x1] %vm105, %v104
    %s107 = scalar_lea.vmem %s0, 14
    %v108 = vld [vmem:[%s107] sm:$0x1]
    %109 = vrot.lane.b32.xlu0 %v108, 56
    %v110 = vpop.permute.xlu0 %109
    %vm111 = vcmask 490944
    %112 = vst.msk [vmem:[#allocation0] sm:$0x1] %vm111, %v110
    %s113 = scalar_lea.vmem %s0, 13
    %v114 = vld [vmem:[%s113] sm:$0x1]
    %115 = vrot.lane.b32.xlu0 %v114, 52
    %v116 = vpop.permute.xlu0 %115
    %vm117 = vcmask 458144
    %118 = vst.msk [vmem:[#allocation0] sm:$0x1] %vm117, %v116
    %s119 = scalar_lea.vmem %s0, 12
    %v120 = vld [vmem:[%s119] sm:$0x1]
    %121 = vrot.lane.b32.xlu0 %v120, 48
    %v122 = vpop.permute.xlu0 %121
    %vm123 = vcmask 425344
    %124 = vst.msk [vmem:[#allocation0] sm:$0x1] %vm123, %v122
    %s125 = scalar_lea.vmem %s0, 11
    %v126 = vld [vmem:[%s125] sm:$0x1]
    %127 = vrot.lane.b32.xlu0 %v126, 44
    %v128 = vpop.permute.xlu0 %127
    %vm129 = vcmask 392544
    %130 = vst.msk [vmem:[#allocation0] sm:$0x1] %vm129, %v128
    %s131 = scalar_lea.vmem %s0, 10
    %v132 = vld [vmem:[%s131] sm:$0x1]
    %133 = vrot.lane.b32.xlu0 %v132, 40
    %v134 = vpop.permute.xlu0 %133
    %vm135 = vcmask 359744
    %136 = vst.msk [vmem:[#allocation0] sm:$0x1] %vm135, %v134
    %s137 = scalar_lea.vmem %s0, 9
    %v138 = vld [vmem:[%s137] sm:$0x1]
    %139 = vrot.lane.b32.xlu0 %v138, 36
    %v140 = vpop.permute.xlu0 %139
    %vm141 = vcmask 326944
    %142 = vst.msk [vmem:[#allocation0] sm:$0x1] %vm141, %v140
    %s143 = scalar_lea.vmem %s0, 8
    %v144 = vld [vmem:[%s143] sm:$0x1]
    %145 = vrot.lane.b32.xlu0 %v144, 32
    %v146 = vpop.permute.xlu0 %145
    %vm147 = vcmask 294144
    %148 = vst.msk [vmem:[#allocation0] sm:$0x1] %vm147, %v146
    %s149 = scalar_lea.vmem %s0, 7
    %v150 = vld [vmem:[%s149] sm:$0x1]
    %151 = vrot.lane.b32.xlu0 %v150, 28
    %v152 = vpop.permute.xlu0 %151
    %vm153 = vcmask 261344
    %154 = vst.msk [vmem:[#allocation0] sm:$0x1] %vm153, %v152
    %s155 = scalar_lea.vmem %s0, 6
    %v156 = vld [vmem:[%s155] sm:$0x1]
    %157 = vrot.lane.b32.xlu0 %v156, 24
    %v158 = vpop.permute.xlu0 %157
    %vm159 = vcmask 228544
    %160 = vst.msk [vmem:[#allocation0] sm:$0x1] %vm159, %v158
    %s161 = scalar_lea.vmem %s0, 5
    %v162 = vld [vmem:[%s161] sm:$0x1]
    %163 = vrot.lane.b32.xlu0 %v162, 20
    %v164 = vpop.permute.xlu0 %163
    %vm165 = vcmask 195744
    %166 = vst.msk [vmem:[#allocation0] sm:$0x1] %vm165, %v164
    %s167 = scalar_lea.vmem %s0, 4
    %v168 = vld [vmem:[%s167] sm:$0x1]
    %169 = vrot.lane.b32.xlu0 %v168, 16
    %v170 = vpop.permute.xlu0 %169
    %vm171 = vcmask 162944
    %172 = vst.msk [vmem:[#allocation0] sm:$0x1] %vm171, %v170
    %s173 = scalar_lea.vmem %s0, 3
    %v174 = vld [vmem:[%s173] sm:$0x1]
    %175 = vrot.lane.b32.xlu0 %v174, 12
    %v176 = vpop.permute.xlu0 %175
    %vm177 = vcmask 130144
    %178 = vst.msk [vmem:[#allocation0] sm:$0x1] %vm177, %v176
    %s179 = scalar_lea.vmem %s0, 2
    %v180 = vld [vmem:[%s179] sm:$0x1]
    %181 = vrot.lane.b32.xlu0 %v180, 8
    %v182 = vpop.permute.xlu0 %181
    %vm183 = vcmask 97344
    %184 = vst.msk [vmem:[#allocation0] sm:$0x1] %vm183, %v182
    %s185 = scalar_lea.vmem %s0, 1
    %v186 = vld [vmem:[%s185] sm:$0x1]
    %187 = vrot.lane.b32.xlu0 %v186, 4
    %v188 = vpop.permute.xlu0 %187
    %vm189 = vcmask 64544
    %190 = vst.msk [vmem:[#allocation0] sm:$0x1] %vm189, %v188
    %s192 = ssub.s32 2, 1
    %v193 = vld [vmem:[#allocation0] sm:%s192]
    %s195 = ssub.s32 2, 1
    %196 = vst [vmem:[%s1] sm:%s195] %v193

// kernel: _lambda_.1
$region0: #{_lambda_.1}
  #allocation0 [shape = 'u32[]', space=smem, size = 0x4, offset = 0x4, fixed_abs, tag = 'smem constant byte address 0x4 - core index']
  #allocation1 [shape = 'u32[72,128]{1,0:T(1,128)}', space=vmem, size = 0x9000, scoped, tag = 'internal scratch']
  #allocation2 [shape = 'f32[1,32,256]{2,1,0:T(8,128)}', space=vmem, size = 0x8000, scoped, tag = 'scratch operand']
  #allocation3 [shape = 'f32[3,16]{1,0:T(4,128)}', space=vmem, size = 0x800, scoped, tag = 'scratch operand']
  #allocation4 [shape = 'f32[2,256]{1,0:T(2,128)}', space=vmem, size = 0x800, scoped, tag = 'scratch operand']
  %s0 = inlined_call_operand.vmem [shape: bf16[1,32,64], index: 0, kind: input, shape index: {}]
  %s1 = inlined_call_operand.vmem [shape: bf16[3,64,256], index: 1, kind: input, shape index: {}]
  %s2 = inlined_call_operand.vmem [shape: f32[1,256], index: 2, kind: input, shape index: {}]
  %s3 = inlined_call_operand.vmem [shape: f32[2,16], index: 3, kind: input, shape index: {}]
  %s4 = inlined_call_operand.vmem [shape: f32[256,16], index: 4, kind: input, shape index: {}]
  %s5 = inlined_call_operand.vmem [shape: f32[16,256], index: 5, kind: input, shape index: {}]
  %s6 = inlined_call_operand.vmem [shape: f32[1,128], index: 6, kind: input, shape index: {}]
  %s7 = inlined_call_operand.vmem [shape: bf16[3,128,128], index: 7, kind: input, shape index: {}]
  %s8 = inlined_call_operand.vmem [shape: f32[1,128], index: 8, kind: input, shape index: {}]
  %s9 = inlined_call_operand.vmem [shape: f32[32,256], index: 9, kind: output, shape index: {}]
  %s10 = sld [smem:[#allocation0]]
  $region85: #{_lambda_.1} parent=0
    _
  %s12 = ssub.s32 1, %s10
  %s13 = scalar_select 0, %s12, %s10
  loop: start=0, step=1, limit=4
  $region2: #{_lambda_.1} parent=0 // loop_pre_header
    _
  $region3: #{_lambda_.1} parent=0 // loop_header
    %s15 = sphi 0, %s19
    %p16 = scmp.ge.s32.totalorder %s15, 4
    %s22 = sphi 0, %s34
    %s23 = sphi 0, %s30
    %s24 = sphi 0, %s22
    %s25 = sphi 0, %s23
    %s26 = sphi 0, %s24
    %s27 = sphi 0, %s25
    %s41 = sphi 0, %s43
    %s44 = sphi 0, %s41
    %s45 = sphi 0, %s44
    %s61 = sphi 0, %s45
    %s65 = sphi 0, %s65
    %s67 = sphi 0, %s65
    %s68 = sphi 0, %s67
    %s82 = sphi 0, %s68
    %s86 = sphi 0, %s86
    %s88 = sphi 0, %s86
    %s89 = sphi 0, %s88
    %s103 = sphi 0, %s89
    %s107 = sphi 0, %s107
    %s109 = sphi 0, %s107
    %s110 = sphi 0, %s109
    %s124 = sphi 0, %s110
    %s128 = sphi 0, %s128
    %s130 = sphi 0, %s128
    %s131 = sphi 0, %s130
    %s145 = sphi 0, %s131
    %s149 = sphi 0, %s149
    %s151 = sphi 0, %s149
    %s152 = sphi 0, %s151
    %s166 = sphi 0, %s152
    %s170 = sphi 0, %s170
    %s172 = sphi 0, %s170
    %s173 = sphi 0, %s172
    %s187 = sphi 0, %s173
    %s191 = sphi 0, %s191
    %s193 = sphi 0, %s191
    %s194 = sphi 0, %s193
    %s208 = sphi 0, %s194
    %s212 = sphi 0, %s212
    %s214 = sphi 0, %s212
    %s215 = sphi 0, %s214
    %s229 = sphi 0, %s215
    %s237 = sphi 0, %s239
    %s240 = sphi 0, %s237
    %s241 = sphi 0, %s240
    %s257 = sphi 0, %s241
  $region4: #{_lambda_.1} parent=0 // loop_header_branch
    %18 = sbr.rel (%p16) target = $region8
  $region5: #{_lambda_.1} parent=0 // loop_body
    %s20 = ssub.s32 %s15, 1
    %s21 = ssub.s32 %s15, 2
    %s28 = sadd.s32 1, %s23
    %p29 = scmp.ge.s32.totalorder %s28, 1
    %s30 = scalar_select %p29, 0, %s28
    %s31 = sadd.s32 1, %s22
    %s32 = scalar_select %p29, %s31, %s22
    %p33 = scmp.ge.s32.totalorder %s32, 2
    %s34 = scalar_select %p33, 0, %s32
    %s35 = ssub.s32 1, %s22
    %s36 = smul.u32 %s23, %s35
    %s37 = ssub.s32 1, %s34
    %s38 = smul.u32 %s30, %s37
    %s39 = ssub.s32 %s36, %s38
    %p40 = scmp.eq.s32.totalorder %s39, 0
    %s42 = sadd.s32 %s41, 1
    %s43 = scalar_select %p40, %s41, %s42
    %p46 = pneg %p40
    %p47 = scmp.eq.s32.totalorder %s15, 1
    %p48 = por %p46, %p47
    %p49 = scmp.ne.s32.totalorder %s41, %s44
    %p50 = scmp.eq.s32.totalorder %s15, 0
    %p51 = por %p49, %p50
    %p52 = scmp.ne.s32.totalorder %s41, %s44
    %p53 = scmp.eq.s32.totalorder %s20, 1
    %p54 = por %p52, %p53
    %p55 = scmp.ne.s32.totalorder %s44, %s45
    %p56 = scmp.eq.s32.totalorder %s20, 0
    %p57 = por %p55, %p56
    %p58 = scmp.ne.s32.totalorder %s44, %s45
    %p59 = scmp.eq.s32.totalorder %s21, 1
    %p60 = por %p58, %p59
    %p62 = scmp.ne.s32.totalorder %s45, %s61
    %p63 = scmp.eq.s32.totalorder %s21, 0
    %p64 = por %p62, %p63
    %s66 = sadd.s32 %s65, 1
    %p69 = scmp.eq.s32.totalorder %s15, 1
    %p70 = scmp.ne.s32.totalorder %s65, %s67
    %p71 = scmp.eq.s32.totalorder %s15, 0
    %p72 = por %p70, %p71
    %p73 = scmp.ne.s32.totalorder %s65, %s67
    %p74 = scmp.eq.s32.totalorder %s20, 1
    %p75 = por %p73, %p74
    %p76 = scmp.ne.s32.totalorder %s67, %s68
    %p77 = scmp.eq.s32.totalorder %s20, 0
    %p78 = por %p76, %p77
    %p79 = scmp.ne.s32.totalorder %s67, %s68
    %p80 = scmp.eq.s32.totalorder %s21, 1
    %p81 = por %p79, %p80
    %p83 = scmp.ne.s32.totalorder %s68, %s82
    %p84 = scmp.eq.s32.totalorder %s21, 0
    %p85 = por %p83, %p84
    %s87 = sadd.s32 %s86, 1
    %p90 = scmp.eq.s32.totalorder %s15, 1
    %p91 = scmp.ne.s32.totalorder %s86, %s88
    %p92 = scmp.eq.s32.totalorder %s15, 0
    %p93 = por %p91, %p92
    %p94 = scmp.ne.s32.totalorder %s86, %s88
    %p95 = scmp.eq.s32.totalorder %s20, 1
    %p96 = por %p94, %p95
    %p97 = scmp.ne.s32.totalorder %s88, %s89
    %p98 = scmp.eq.s32.totalorder %s20, 0
    %p99 = por %p97, %p98
    %p100 = scmp.ne.s32.totalorder %s88, %s89
    %p101 = scmp.eq.s32.totalorder %s21, 1
    %p102 = por %p100, %p101
    %p104 = scmp.ne.s32.totalorder %s89, %s103
    %p105 = scmp.eq.s32.totalorder %s21, 0
    %p106 = por %p104, %p105
    %s108 = sadd.s32 %s107, 1
    %p111 = scmp.eq.s32.totalorder %s15, 1
    %p112 = scmp.ne.s32.totalorder %s107, %s109
    %p113 = scmp.eq.s32.totalorder %s15, 0
    %p114 = por %p112, %p113
    %p115 = scmp.ne.s32.totalorder %s107, %s109
    %p116 = scmp.eq.s32.totalorder %s20, 1
    %p117 = por %p115, %p116
    %p118 = scmp.ne.s32.totalorder %s109, %s110
    %p119 = scmp.eq.s32.totalorder %s20, 0
    %p120 = por %p118, %p119
    %p121 = scmp.ne.s32.totalorder %s109, %s110
    %p122 = scmp.eq.s32.totalorder %s21, 1
    %p123 = por %p121, %p122
    %p125 = scmp.ne.s32.totalorder %s110, %s124
    %p126 = scmp.eq.s32.totalorder %s21, 0
    %p127 = por %p125, %p126
    %s129 = sadd.s32 %s128, 1
    %p132 = scmp.eq.s32.totalorder %s15, 1
    %p133 = scmp.ne.s32.totalorder %s128, %s130
    %p134 = scmp.eq.s32.totalorder %s15, 0
    %p135 = por %p133, %p134
    %p136 = scmp.ne.s32.totalorder %s128, %s130
    %p137 = scmp.eq.s32.totalorder %s20, 1
    %p138 = por %p136, %p137
    %p139 = scmp.ne.s32.totalorder %s130, %s131
    %p140 = scmp.eq.s32.totalorder %s20, 0
    %p141 = por %p139, %p140
    %p142 = scmp.ne.s32.totalorder %s130, %s131
    %p143 = scmp.eq.s32.totalorder %s21, 1
    %p144 = por %p142, %p143
    %p146 = scmp.ne.s32.totalorder %s131, %s145
    %p147 = scmp.eq.s32.totalorder %s21, 0
    %p148 = por %p146, %p147
    %s150 = sadd.s32 %s149, 1
    %p153 = scmp.eq.s32.totalorder %s15, 1
    %p154 = scmp.ne.s32.totalorder %s149, %s151
    %p155 = scmp.eq.s32.totalorder %s15, 0
    %p156 = por %p154, %p155
    %p157 = scmp.ne.s32.totalorder %s149, %s151
    %p158 = scmp.eq.s32.totalorder %s20, 1
    %p159 = por %p157, %p158
    %p160 = scmp.ne.s32.totalorder %s151, %s152
    %p161 = scmp.eq.s32.totalorder %s20, 0
    %p162 = por %p160, %p161
    %p163 = scmp.ne.s32.totalorder %s151, %s152
    %p164 = scmp.eq.s32.totalorder %s21, 1
    %p165 = por %p163, %p164
    %p167 = scmp.ne.s32.totalorder %s152, %s166
    %p168 = scmp.eq.s32.totalorder %s21, 0
    %p169 = por %p167, %p168
    %s171 = sadd.s32 %s170, 1
    %p174 = scmp.eq.s32.totalorder %s15, 1
    %p175 = scmp.ne.s32.totalorder %s170, %s172
    %p176 = scmp.eq.s32.totalorder %s15, 0
    %p177 = por %p175, %p176
    %p178 = scmp.ne.s32.totalorder %s170, %s172
    %p179 = scmp.eq.s32.totalorder %s20, 1
    %p180 = por %p178, %p179
    %p181 = scmp.ne.s32.totalorder %s172, %s173
    %p182 = scmp.eq.s32.totalorder %s20, 0
    %p183 = por %p181, %p182
    %p184 = scmp.ne.s32.totalorder %s172, %s173
    %p185 = scmp.eq.s32.totalorder %s21, 1
    %p186 = por %p184, %p185
    %p188 = scmp.ne.s32.totalorder %s173, %s187
    %p189 = scmp.eq.s32.totalorder %s21, 0
    %p190 = por %p188, %p189
    %s192 = sadd.s32 %s191, 1
    %p195 = scmp.eq.s32.totalorder %s15, 1
    %p196 = scmp.ne.s32.totalorder %s191, %s193
    %p197 = scmp.eq.s32.totalorder %s15, 0
    %p198 = por %p196, %p197
    %p199 = scmp.ne.s32.totalorder %s191, %s193
    %p200 = scmp.eq.s32.totalorder %s20, 1
    %p201 = por %p199, %p200
    %p202 = scmp.ne.s32.totalorder %s193, %s194
    %p203 = scmp.eq.s32.totalorder %s20, 0
    %p204 = por %p202, %p203
    %p205 = scmp.ne.s32.totalorder %s193, %s194
    %p206 = scmp.eq.s32.totalorder %s21, 1
    %p207 = por %p205, %p206
    %p209 = scmp.ne.s32.totalorder %s194, %s208
    %p210 = scmp.eq.s32.totalorder %s21, 0
    %p211 = por %p209, %p210
    %s213 = sadd.s32 %s212, 1
    %p216 = scmp.eq.s32.totalorder %s15, 1
    %p217 = scmp.ne.s32.totalorder %s212, %s214
    %p218 = scmp.eq.s32.totalorder %s15, 0
    %p219 = por %p217, %p218
    %p220 = scmp.ne.s32.totalorder %s212, %s214
    %p221 = scmp.eq.s32.totalorder %s20, 1
    %p222 = por %p220, %p221
    %p223 = scmp.ne.s32.totalorder %s214, %s215
    %p224 = scmp.eq.s32.totalorder %s20, 0
    %p225 = por %p223, %p224
    %p226 = scmp.ne.s32.totalorder %s214, %s215
    %p227 = scmp.eq.s32.totalorder %s21, 1
    %p228 = por %p226, %p227
    %p230 = scmp.ne.s32.totalorder %s215, %s229
    %p231 = scmp.eq.s32.totalorder %s21, 0
    %p232 = por %p230, %p231
    %s233 = smul.u32 %s23, %s22
    %s234 = smul.u32 %s30, %s34
    %s235 = ssub.s32 %s233, %s234
    %p236 = scmp.eq.s32.totalorder %s235, 0
    %s238 = sadd.s32 %s237, 1
    %s239 = scalar_select %p236, %s237, %s238
    %p242 = pneg %p236
    %p243 = scmp.eq.s32.totalorder %s15, 1
    %p244 = por %p242, %p243
    %p245 = scmp.ne.s32.totalorder %s237, %s240
    %p246 = scmp.eq.s32.totalorder %s15, 0
    %p247 = por %p245, %p246
    %p248 = scmp.ne.s32.totalorder %s237, %s240
    %p249 = scmp.eq.s32.totalorder %s20, 1
    %p250 = por %p248, %p249
    %p251 = scmp.ne.s32.totalorder %s240, %s241
    %p252 = scmp.eq.s32.totalorder %s20, 0
    %p253 = por %p251, %p252
    %p254 = scmp.ne.s32.totalorder %s240, %s241
    %p255 = scmp.eq.s32.totalorder %s21, 1
    %p256 = por %p254, %p255
    %p258 = scmp.ne.s32.totalorder %s241, %s257
    %p259 = scmp.eq.s32.totalorder %s21, 0
    %p260 = por %p258, %p259
    %p261 = scmp.le.s32.totalorder 1, %s15
    %p262 = scmp.lt.s32.totalorder %s15, 3
    %p263 = pnand %p261, %p262
    %p264 = pneg %p263
    // Predicated region
    $region9: #{_lambda_.1} parent=5 // pred_check
      _
    $region10: #{_lambda_.1} parent=5 // pred_check_branch
      %266 = sbr.rel (%p263) target = $region12
    $region11: #{_lambda_.1} parent=5 // pred_region
      %s267 = ssub.s32 %s15, 1
      // Predicated region
      $region13: #{_lambda_.1} parent=11 // pred_check
        %p268 = pneg %p78
      $region14: #{_lambda_.1} parent=11 // pred_check_branch
        %270 = sbr.rel (%p268) target = $region16
      $region15: #{_lambda_.1} parent=11 // pred_region
        _
      $region16: #{_lambda_.1} parent=11 // pred_fallthru
        _
      // Predicated region
      $region17: #{_lambda_.1} parent=11 // pred_check
        %p271 = pneg %p99
      $region18: #{_lambda_.1} parent=11 // pred_check_branch
        %273 = sbr.rel (%p271) target = $region20
      $region19: #{_lambda_.1} parent=11 // pred_region
        _
      $region20: #{_lambda_.1} parent=11 // pred_fallthru
        _
      // Predicated region
      $region21: #{_lambda_.1} parent=11 // pred_check
        %p274 = pneg %p120
      $region22: #{_lambda_.1} parent=11 // pred_check_branch
        %276 = sbr.rel (%p274) target = $region24
      $region23: #{_lambda_.1} parent=11 // pred_region
        _
      $region24: #{_lambda_.1} parent=11 // pred_fallthru
        _
      // Predicated region
      $region25: #{_lambda_.1} parent=11 // pred_check
        %p277 = pneg %p141
      $region26: #{_lambda_.1} parent=11 // pred_check_branch
        %279 = sbr.rel (%p277) target = $region28
      $region27: #{_lambda_.1} parent=11 // pred_region
        _
      $region28: #{_lambda_.1} parent=11 // pred_fallthru
        _
      // Predicated region
      $region29: #{_lambda_.1} parent=11 // pred_check
        %p280 = pneg %p162
      $region30: #{_lambda_.1} parent=11 // pred_check_branch
        %282 = sbr.rel (%p280) target = $region32
      $region31: #{_lambda_.1} parent=11 // pred_region
        _
      $region32: #{_lambda_.1} parent=11 // pred_fallthru
        _
      // Predicated region
      $region33: #{_lambda_.1} parent=11 // pred_check
        %p283 = pneg %p183
      $region34: #{_lambda_.1} parent=11 // pred_check_branch
        %285 = sbr.rel (%p283) target = $region36
      $region35: #{_lambda_.1} parent=11 // pred_region
        _
      $region36: #{_lambda_.1} parent=11 // pred_fallthru
        _
      // Predicated region
      $region37: #{_lambda_.1} parent=11 // pred_check
        %p286 = pneg %p204
      $region38: #{_lambda_.1} parent=11 // pred_check_branch
        %288 = sbr.rel (%p286) target = $region40
      $region39: #{_lambda_.1} parent=11 // pred_region
        _
      $region40: #{_lambda_.1} parent=11 // pred_fallthru
        _
      // Predicated region
      $region41: #{_lambda_.1} parent=11 // pred_check
        %p289 = pneg %p225
      $region42: #{_lambda_.1} parent=11 // pred_check_branch
        %291 = sbr.rel (%p289) target = $region44
      $region43: #{_lambda_.1} parent=11 // pred_region
        _
      $region44: #{_lambda_.1} parent=11 // pred_fallthru
        _
    $region12: #{_lambda_.1} parent=5 // pred_fallthru
      _
    %p292 = scmp.lt.s32.totalorder %s15, 2
    // Predicated region
    $region45: #{_lambda_.1} parent=5 // pred_check
      %p293 = pneg %p292
    $region46: #{_lambda_.1} parent=5 // pred_check_branch
      %295 = sbr.rel (%p293) target = $region48
    $region47: #{_lambda_.1} parent=5 // pred_region
      // Predicated region
      $region49: #{_lambda_.1} parent=47 // pred_check
        %p296 = pneg %p51
      $region50: #{_lambda_.1} parent=47 // pred_check_branch
        %298 = sbr.rel (%p296) target = $region52
      $region51: #{_lambda_.1} parent=47 // pred_region
        %s299 = ssub.s32 1, %s22
        %s300 = smul.u32 %s23, %s299
        %p301 = scmp.lt.s32.totalorder %s300, 0
        %s302 = scalar_select %p301, %s300, 0
        %s303 = smul.addr %s302, 4
        %s304 = smul.addr %s303, 4
        %s305 = scalar_lea.vmem %s0, %s304
        %s306 = ssub.s32 1, %s22
        %s307 = smul.u32 %s23, %s306
      $region52: #{_lambda_.1} parent=47 // pred_fallthru
        _
    $region48: #{_lambda_.1} parent=5 // pred_fallthru
      _
    %p308 = scmp.le.s32.totalorder 1, %s15
    %p309 = scmp.lt.s32.totalorder %s15, 3
    %p310 = pnand %p308, %p309
    %p311 = pneg %p310
    // Predicated region
    $region53: #{_lambda_.1} parent=5 // pred_check
      _
    $region54: #{_lambda_.1} parent=5 // pred_check_branch
      %313 = sbr.rel (%p310) target = $region56
    $region55: #{_lambda_.1} parent=5 // pred_region
      %s314 = ssub.s32 %s15, 1
      %s315 = ssub.s32 1, %s24
      %s316 = smul.u32 %s25, %s315
      %p317 = scmp.lt.s32.totalorder %s316, 0
      %s318 = scalar_select %p317, %s316, 0
      %s319 = smul.addr %s318, 4
      %s320 = smul.addr %s319, 4
      %s321 = scalar_lea.vmem %s0, %s320
      %p322 = pneg %p57
      %p323 = pneg %p54
      %p324 = pneg %p78
      %p325 = pneg %p75
      %p326 = pneg %p99
      %p327 = pneg %p96
      %p328 = pneg %p120
      %p329 = pneg %p117
      %p330 = pneg %p141
      %p331 = pneg %p138
      %p332 = pneg %p162
      %p333 = pneg %p159
      %p334 = pneg %p183
      %p335 = pneg %p180
      %p336 = pneg %p204
      %p337 = pneg %p201
      %p338 = pneg %p225
      %p339 = pneg %p222
      %p340 = pneg %p253
      %p341 = pneg %p250
      %s342 = smul.u32 %s25, %s24
      %s343 = smul.u32 4, %s342
      %p344 = scmp.lt.s32.totalorder %s343, 3
      %s345 = scalar_select %p344, %s343, 3
      %s346 = smul.addr %s345, 2
      %s347 = smul.addr %s346, 8
      %s348 = scalar_lea.vmem %s9, %s347
      %s349 = ssub.s32 1, %s24
      %s350 = smul.u32 %s25, %s349
      %p351 = scmp.lt.s32.totalorder %s350, 0
      %s352 = scalar_select %p351, %s350, 0
      %s353 = smul.addr %s352, 4
      %s354 = smul.addr %s353, 4
      %s355 = scalar_lea.vmem %s0, %s354
      %s356 = ssub.s32 1, %s24
      %s357 = smul.u32 %s25, %s356
      %s358 = smul.u32 %s25, %s24
      %s359 = smul.u32 4, %s358
      %p360 = scmp.lt.s32.totalorder %s359, 3
      %s361 = scalar_select %p360, %s359, 3
      %s362 = smul.addr %s361, 2
      %s363 = smul.addr %s362, 8
      %s364 = scalar_lea.vmem %s9, %s363
      %s365 = smul.u32 %s25, %s24
      %s366 = smul.u32 4, %s365
      %v370 = vlaneseq
      %v371 = vshrl.u32 %v370, 7
      %v372 = vadd.s32 %v371, 8
      %v373 = vadd.s32 %v371, 16
      %v374 = vadd.s32 %v371, 24
      %vm375 = vcmp.lt.s32.totalorder %v371, 0
      %v376 = vsub.s32 0, %v371
      %v377 = vsel %vm375, %v376, %v371
      %v378 = vshrl.u32 %v377, 4
      %v379 = vand.u32 %v377, 15
      %v380 = vsub.s32 0, %v379
      %v381 = vsel %vm375, %v380, %v379
      %vm382 = vcmp.lt.s32.totalorder %v372, 0
      %v383 = vsub.s32 0, %v372
      %v384 = vsel %vm382, %v383, %v372
      %v385 = vshrl.u32 %v384, 4
      %v386 = vand.u32 %v384, 15
      %v387 = vsub.s32 0, %v386
      %v388 = vsel %vm382, %v387, %v386
      %vm389 = vcmp.lt.s32.totalorder %v373, 0
      %v390 = vsub.s32 0, %v373
      %v391 = vsel %vm389, %v390, %v373
      %v392 = vshrl.u32 %v391, 4
      %v393 = vand.u32 %v391, 15
      %v394 = vsub.s32 0, %v393
      %v395 = vsel %vm389, %v394, %v393
      %vm396 = vcmp.lt.s32.totalorder %v374, 0
      %v397 = vsub.s32 0, %v374
      %v398 = vsel %vm396, %v397, %v374
      %v399 = vshrl.u32 %v398, 4
      %v400 = vand.u32 %v398, 15
      %v401 = vsub.s32 0, %v400
      %v402 = vsel %vm396, %v401, %v400
      %vm403 = vcmp.ne.s32.totalorder %v381, 0
      %vm404 = vcmp.ne.s32.totalorder %v388, 0
      %vm405 = vcmp.ne.s32.totalorder %v395, 0
      %vm406 = vcmp.ne.s32.totalorder %v402, 0
      %vm407 = vcmp.lt.s32.totalorder %v381, 0
      %vm408 = vcmp.lt.s32.totalorder %v388, 0
      %vm409 = vcmp.lt.s32.totalorder %v395, 0
      %vm410 = vcmp.lt.s32.totalorder %v402, 0
      %vm411 = vmand %vm407, %vm403
      %vm412 = vmand %vm408, %vm404
      %vm413 = vmand %vm409, %vm405
      %vm414 = vmand %vm410, %vm406
      %v415 = vadd.s32 %v381, 16
      %v416 = vadd.s32 %v388, 16
      %v417 = vadd.s32 %v395, 16
      %v418 = vadd.s32 %v402, 16
      %v419 = vsel %vm411, %v415, %v381
      %v420 = vsel %vm412, %v416, %v388
      %v421 = vsel %vm413, %v417, %v395
      %v422 = vsel %vm414, %v418, %v402
      %vm423 = vcmp.ne.s32.totalorder %v419, 0
      %vm424 = vcmp.ne.s32.totalorder %v420, 0
      %vm425 = vcmp.ne.s32.totalorder %v421, 0
      %vm426 = vcmp.ne.s32.totalorder %v422, 0
      %vm427 = vcmp.ne.s32.totalorder %v419, 15
      %vm428 = vcmp.ne.s32.totalorder %v420, 15
      %vm429 = vcmp.ne.s32.totalorder %v421, 15
      %vm430 = vcmp.ne.s32.totalorder %v422, 15
      %p431 = scmp.eq.s32.totalorder %s24, 0
      %p432 = scmp.eq.s32.totalorder %s25, 0
      %p433 = pnand %p431, %p432
      %p434 = pneg %p433
      // Predicated region
      $region57: #{_lambda_.1} parent=55 // pred_check
        _
      $region58: #{_lambda_.1} parent=55 // pred_check_branch
        %436 = sbr.rel (%p433) target = $region60
      $region59: #{_lambda_.1} parent=55 // pred_region
        %vm437 = vcmask 124928
        %438 = vst.msk [vmem:[#allocation3] sm:$0x7] %vm437, 0.0
      $region60: #{_lambda_.1} parent=55 // pred_fallthru
        _
      // Predicated region
      $region61: #{_lambda_.1} parent=55 // pred_check
        %p439 = pneg %p431
      $region62: #{_lambda_.1} parent=55 // pred_check_branch
        %441 = sbr.rel (%p439) target = $region64
      $region63: #{_lambda_.1} parent=55 // pred_region
        %v442 = vld [vmem:[%s355] sm:$0xf]
        %v443 = vld [vmem:[%s355 + $0x4] sm:$0xf]
        %v444 = vld [vmem:[%s355 + $0x8] sm:$0xf]
        %v445 = vld [vmem:[%s355 + $0xc] sm:$0xf]
        %v450 = vunpack.c.l.b16 %v442
        %v451 = vunpack.c.l.b16 %v443
        %v452 = vunpack.c.l.b16 %v444
        %v453 = vunpack.c.l.b16 %v445
        %v454 = vpack.c.b16 %v451, %v450
        %v455 = vpack.c.b16 %v453, %v452
        %vm456 = vsmask.f32 256
        %v458 = vshrl.u32 %v454, 16
        %v460 = vrot.slane %v458, 7
        %v461 = vshll.u32 %v454, 16
        %v463 = vor.u32 %v460, %v461
        %v465 = vshrl.u32 %v455, 16
        %v467 = vrot.slane %v465, 7
        %v468 = vshll.u32 %v455, 16
        %v470 = vor.u32 %v467, %v468
        %v471 = vsel %vm456, %v460, %v470
        %vm474 = vcmask 1040384
        %vm475 = vmand %vm474, %vm456
        %v476 = vsel %vm475, 0, %v463
        %v477 = vsel %vm423, 1, 0
        %v478 = vsel %vm424, 1, 0
        %v479 = vsel %vm425, 1, 0
        %v480 = vsel %vm426, 1, 0
        %vm481 = vcmp.eq.s32.totalorder %v477, 1
        %vm482 = vcmp.eq.s32.totalorder %v478, 1
        %vm483 = vcmp.eq.s32.totalorder %v479, 1
        %vm484 = vcmp.eq.s32.totalorder %v480, 1
        %vm485 = vmpackc.low %vm481, %vm481
        %vm486 = vmpackc.low %vm482, %vm482
        %vm487 = vmpackc.low %vm483, %vm483
        %vm488 = vmpackc.low %vm484, %vm484
        %v489 = vsel %vm485, 65537, 0
        %v490 = vsel %vm486, 65537, 0
        %v491 = vsel %vm487, 65537, 0
        %v492 = vsel %vm488, 65537, 0
        %v493 = vunpack.c.l.b16 %v489
        %v494 = vunpack.c.l.b16 %v490
        %v495 = vunpack.c.l.b16 %v491
        %v496 = vunpack.c.l.b16 %v492
        %v497 = vpack.c.b16 %v494, %v493
        %v498 = vpack.c.b16 %v496, %v495
        %v499 = vunpack.c.l.b16 %v497
        %v500 = vunpack.c.h.b16 %v497
        %v501 = vunpack.c.l.b16 0
        %v502 = vunpack.c.h.b16 0
        %vm503 = vcmp.ne.s32.totalorder %v499, %v501
        %vm504 = vcmp.ne.s32.totalorder %v500, %v502
        %vm505 = vmpackc.low %vm504, %vm503
        %v506 = vunpack.c.l.b16 %v498
        %v507 = vunpack.c.h.b16 %v498
        %v508 = vunpack.c.l.b16 0
        %v509 = vunpack.c.h.b16 0
        %vm510 = vcmp.ne.s32.totalorder %v506, %v508
        %vm511 = vcmp.ne.s32.totalorder %v507, %v509
        %vm512 = vmpackc.low %vm511, %vm510
        %v513 = vsel %vm505, %v476, 0
        %v514 = vsel %vm512, %v471, 0
        %vm515 = vsmask.f32 7424
        %v516 = vrot.slane %v461, 1
        %v517 = vor.u32 %v458, %v516
        %v518 = vrot.slane %v468, 1
        %v519 = vsel %vm515, %v517, %v518
        %v520 = vor.u32 %v465, %v518
        %vm523 = vcmask 1047552
        %vm524 = vmand %vm523, %vm515
        %v525 = vsel %vm524, %v520, 0
        %v526 = vsel %vm427, 1, 0
        %v527 = vsel %vm428, 1, 0
        %v528 = vsel %vm429, 1, 0
        %v529 = vsel %vm430, 1, 0
        %vm530 = vcmp.eq.s32.totalorder %v526, 1
        %vm531 = vcmp.eq.s32.totalorder %v527, 1
        %vm532 = vcmp.eq.s32.totalorder %v528, 1
        %vm533 = vcmp.eq.s32.totalorder %v529, 1
        %vm534 = vmpackc.low %vm530, %vm530
        %vm535 = vmpackc.low %vm531, %vm531
        %vm536 = vmpackc.low %vm532, %vm532
        %vm537 = vmpackc.low %vm533, %vm533
        %v538 = vsel %vm534, 65537, 0
        %v539 = vsel %vm535, 65537, 0
        %v540 = vsel %vm536, 65537, 0
        %v541 = vsel %vm537, 65537, 0
        %v542 = vunpack.c.l.b16 %v538
        %v543 = vunpack.c.l.b16 %v539
        %v544 = vunpack.c.l.b16 %v540
        %v545 = vunpack.c.l.b16 %v541
        %v546 = vpack.c.b16 %v543, %v542
        %v547 = vpack.c.b16 %v545, %v544
        %v548 = vunpack.c.l.b16 %v546
        %v549 = vunpack.c.h.b16 %v546
        %v550 = vunpack.c.l.b16 0
        %v551 = vunpack.c.h.b16 0
        %vm552 = vcmp.ne.s32.totalorder %v548, %v550
        %vm553 = vcmp.ne.s32.totalorder %v549, %v551
        %vm554 = vmpackc.low %vm553, %vm552
        %v555 = vunpack.c.l.b16 %v547
        %v556 = vunpack.c.h.b16 %v547
        %v557 = vunpack.c.l.b16 0
        %v558 = vunpack.c.h.b16 0
        %vm559 = vcmp.ne.s32.totalorder %v555, %v557
        %vm560 = vcmp.ne.s32.totalorder %v556, %v558
        %vm561 = vmpackc.low %vm560, %vm559
        %v562 = vsel %vm554, %v519, 0
        %v563 = vsel %vm561, %v525, 0
        %v564 = vld [vmem:[%s1] sm:$0xff]
        %v565 = vld [vmem:[%s1 + $0x8] sm:$0xff]
        %v566 = vld [vmem:[%s1 + $0x10] sm:$0xff]
        %v567 = vld [vmem:[%s1 + $0x18] sm:$0xff]
        %v568 = vld [vmem:[%s1 + $0x20] sm:$0xff]
        %v569 = vld [vmem:[%s1 + $0x28] sm:$0xff]
        %v570 = vld [vmem:[%s1 + $0x30] sm:$0xff]
        %v571 = vld [vmem:[%s1 + $0x38] sm:$0xff]
        %s572 = scalar_lea.vmem %s1, 64
        %v573 = vld [vmem:[%s572] sm:$0xff]
        %v574 = vld [vmem:[%s572 + $0x8] sm:$0xff]
        %v575 = vld [vmem:[%s572 + $0x10] sm:$0xff]
        %v576 = vld [vmem:[%s572 + $0x18] sm:$0xff]
        %v577 = vld [vmem:[%s572 + $0x20] sm:$0xff]
        %v578 = vld [vmem:[%s572 + $0x28] sm:$0xff]
        %v579 = vld [vmem:[%s572 + $0x30] sm:$0xff]
        %v580 = vld [vmem:[%s572 + $0x38] sm:$0xff]
        %v589 = vunpack.c.l.b16 %v573
        %v590 = vunpack.c.h.b16 %v573
        %v591 = vunpack.c.l.b16 %v574
        %v592 = vunpack.c.h.b16 %v574
        %v593 = vunpack.c.l.b16 %v575
        %v594 = vunpack.c.h.b16 %v575
        %v595 = vunpack.c.l.b16 %v576
        %v596 = vunpack.c.h.b16 %v576
        %v597 = vunpack.c.l.b16 %v577
        %v598 = vunpack.c.h.b16 %v577
        %v599 = vunpack.c.l.b16 %v578
        %v600 = vunpack.c.h.b16 %v578
        %v601 = vunpack.c.l.b16 %v579
        %v602 = vunpack.c.h.b16 %v579
        %v603 = vunpack.c.l.b16 %v580
        %v604 = vunpack.c.h.b16 %v580
        %v605 = vpack.c.b16 %v591, %v589
        %v606 = vpack.c.b16 %v592, %v590
        %v607 = vpack.c.b16 %v595, %v593
        %v608 = vpack.c.b16 %v596, %v594
        %v609 = vpack.c.b16 %v599, %v597
        %v610 = vpack.c.b16 %v600, %v598
        %v611 = vpack.c.b16 %v603, %v601
        %v612 = vpack.c.b16 %v604, %v602
        %vm621 = vcmask 523264
        %v622 = vsel %vm621, %v454, 0
        %v624 = vsel %vm621, %v455, 0
        %626 = vmatpush.bf16.msra.mxu0 0
        %627 = vmatpush.bf16.msra.mxu0 0
        %628 = vmatpush.bf16.msra.mxu0 0
        %629 = vmatpush.bf16.msra.mxu0 0
        %630 = vmatpush.bf16.msra.mxu0 %v611
        %631 = vmatpush.bf16.msra.mxu0 %v609
        %632 = vmatpush.bf16.msra.mxu0 %v607
        %633 = vmatpush.bf16.msra.mxu0 %v605
        %634 = vmatmul.bf16.gmra.mxu0 %v622
        %v635 = vpop.f32.mrf.mxu0
        %v636 = vadd.f32 0.0, %v635
        %v637 = vpop.f32.mrf.mxu0
        %v638 = vadd.f32 0.0, %v637
        %639 = vmatmul.bf16.gmra.mxu0 %v624
        %v640 = vpop.f32.mrf.mxu0
        %v641 = vadd.f32 0.0, %v640
        %v642 = vpop.f32.mrf.mxu0
        %v643 = vadd.f32 0.0, %v642
        %644 = vdwg.mxu0
        %645 = vmatpush.bf16.msra.mxu0 0
        %646 = vmatpush.bf16.msra.mxu0 0
        %647 = vmatpush.bf16.msra.mxu0 0
        %648 = vmatpush.bf16.msra.mxu0 0
        %649 = vmatpush.bf16.msra.mxu0 %v612
        %650 = vmatpush.bf16.msra.mxu0 %v610
        %651 = vmatpush.bf16.msra.mxu0 %v608
        %652 = vmatpush.bf16.msra.mxu0 %v606
        %653 = vmatmul.bf16.gmra.mxu0 %v622
        %v654 = vpop.f32.mrf.mxu0
        %v655 = vadd.f32 0.0, %v654
        %v656 = vpop.f32.mrf.mxu0
        %v657 = vadd.f32 0.0, %v656
        %658 = vmatmul.bf16.gmra.mxu0 %v624
        %v659 = vpop.f32.mrf.mxu0
        %v660 = vadd.f32 0.0, %v659
        %v661 = vpop.f32.mrf.mxu0
        %v662 = vadd.f32 0.0, %v661
        %663 = vdwg.mxu0
        %v672 = vunpack.c.l.b16 %v564
        %v673 = vunpack.c.h.b16 %v564
        %v674 = vunpack.c.l.b16 %v565
        %v675 = vunpack.c.h.b16 %v565
        %v676 = vunpack.c.l.b16 %v566
        %v677 = vunpack.c.h.b16 %v566
        %v678 = vunpack.c.l.b16 %v567
        %v679 = vunpack.c.h.b16 %v567
        %v680 = vunpack.c.l.b16 %v568
        %v681 = vunpack.c.h.b16 %v568
        %v682 = vunpack.c.l.b16 %v569
        %v683 = vunpack.c.h.b16 %v569
        %v684 = vunpack.c.l.b16 %v570
        %v685 = vunpack.c.h.b16 %v570
        %v686 = vunpack.c.l.b16 %v571
        %v687 = vunpack.c.h.b16 %v571
        %v688 = vpack.c.b16 %v674, %v672
        %v689 = vpack.c.b16 %v675, %v673
        %v690 = vpack.c.b16 %v678, %v676
        %v691 = vpack.c.b16 %v679, %v677
        %v692 = vpack.c.b16 %v682, %v680
        %v693 = vpack.c.b16 %v683, %v681
        %v694 = vpack.c.b16 %v686, %v684
        %v695 = vpack.c.b16 %v687, %v685
        %v705 = vsel %vm621, %v513, 0
        %v708 = vsel %vm621, %v514, 0
        %710 = vmatpush.bf16.msra.mxu0 0
        %711 = vmatpush.bf16.msra.mxu0 0
        %712 = vmatpush.bf16.msra.mxu0 0
        %713 = vmatpush.bf16.msra.mxu0 0
        %714 = vmatpush.bf16.msra.mxu0 %v694
        %715 = vmatpush.bf16.msra.mxu0 %v692
        %716 = vmatpush.bf16.msra.mxu0 %v690
        %717 = vmatpush.bf16.msra.mxu0 %v688
        %718 = vmatmul.bf16.gmra.mxu0 %v705
        %v719 = vpop.f32.mrf.mxu0
        %v720 = vadd.f32 %v636, %v719
        %v721 = vpop.f32.mrf.mxu0
        %v722 = vadd.f32 %v638, %v721
        %723 = vmatmul.bf16.gmra.mxu0 %v708
        %v724 = vpop.f32.mrf.mxu0
        %v725 = vadd.f32 %v641, %v724
        %v726 = vpop.f32.mrf.mxu0
        %v727 = vadd.f32 %v643, %v726
        %728 = vdwg.mxu0
        %729 = vmatpush.bf16.msra.mxu0 0
        %730 = vmatpush.bf16.msra.mxu0 0
        %731 = vmatpush.bf16.msra.mxu0 0
        %732 = vmatpush.bf16.msra.mxu0 0
        %733 = vmatpush.bf16.msra.mxu0 %v695
        %734 = vmatpush.bf16.msra.mxu0 %v693
        %735 = vmatpush.bf16.msra.mxu0 %v691
        %736 = vmatpush.bf16.msra.mxu0 %v689
        %737 = vmatmul.bf16.gmra.mxu0 %v705
        %v738 = vpop.f32.mrf.mxu0
        %v739 = vadd.f32 %v655, %v738
        %v740 = vpop.f32.mrf.mxu0
        %v741 = vadd.f32 %v657, %v740
        %742 = vmatmul.bf16.gmra.mxu0 %v708
        %v743 = vpop.f32.mrf.mxu0
        %v744 = vadd.f32 %v660, %v743
        %v745 = vpop.f32.mrf.mxu0
        %v746 = vadd.f32 %v662, %v745
        %747 = vdwg.mxu0
        %s748 = scalar_lea.vmem %s1, 128
        %v749 = vld [vmem:[%s748] sm:$0xff]
        %v750 = vld [vmem:[%s748 + $0x8] sm:$0xff]
        %v751 = vld [vmem:[%s748 + $0x10] sm:$0xff]
        %v752 = vld [vmem:[%s748 + $0x18] sm:$0xff]
        %v753 = vld [vmem:[%s748 + $0x20] sm:$0xff]
        %v754 = vld [vmem:[%s748 + $0x28] sm:$0xff]
        %v755 = vld [vmem:[%s748 + $0x30] sm:$0xff]
        %v756 = vld [vmem:[%s748 + $0x38] sm:$0xff]
        %v765 = vunpack.c.l.b16 %v749
        %v766 = vunpack.c.h.b16 %v749
        %v767 = vunpack.c.l.b16 %v750
        %v768 = vunpack.c.h.b16 %v750
        %v769 = vunpack.c.l.b16 %v751
        %v770 = vunpack.c.h.b16 %v751
        %v771 = vunpack.c.l.b16 %v752
        %v772 = vunpack.c.h.b16 %v752
        %v773 = vunpack.c.l.b16 %v753
        %v774 = vunpack.c.h.b16 %v753
        %v775 = vunpack.c.l.b16 %v754
        %v776 = vunpack.c.h.b16 %v754
        %v777 = vunpack.c.l.b16 %v755
        %v778 = vunpack.c.h.b16 %v755
        %v779 = vunpack.c.l.b16 %v756
        %v780 = vunpack.c.h.b16 %v756
        %v781 = vpack.c.b16 %v767, %v765
        %v782 = vpack.c.b16 %v768, %v766
        %v783 = vpack.c.b16 %v771, %v769
        %v784 = vpack.c.b16 %v772, %v770
        %v785 = vpack.c.b16 %v775, %v773
        %v786 = vpack.c.b16 %v776, %v774
        %v787 = vpack.c.b16 %v779, %v777
        %v788 = vpack.c.b16 %v780, %v778
        %v798 = vsel %vm621, %v562, 0
        %v801 = vsel %vm621, %v563, 0
        %803 = vmatpush.bf16.msra.mxu0 0
        %804 = vmatpush.bf16.msra.mxu0 0
        %805 = vmatpush.bf16.msra.mxu0 0
        %806 = vmatpush.bf16.msra.mxu0 0
        %807 = vmatpush.bf16.msra.mxu0 %v787
        %808 = vmatpush.bf16.msra.mxu0 %v785
        %809 = vmatpush.bf16.msra.mxu0 %v783
        %810 = vmatpush.bf16.msra.mxu0 %v781
        %811 = vmatmul.bf16.gmra.mxu0 %v798
        %v812 = vpop.f32.mrf.mxu0
        %v813 = vadd.f32 0.0, %v812
        %v814 = vpop.f32.mrf.mxu0
        %v815 = vadd.f32 0.0, %v814
        %816 = vmatmul.bf16.gmra.mxu0 %v801
        %v817 = vpop.f32.mrf.mxu0
        %v818 = vadd.f32 0.0, %v817
        %v819 = vpop.f32.mrf.mxu0
        %v820 = vadd.f32 0.0, %v819
        %821 = vdwg.mxu0
        %822 = vmatpush.bf16.msra.mxu0 0
        %823 = vmatpush.bf16.msra.mxu0 0
        %824 = vmatpush.bf16.msra.mxu0 0
        %825 = vmatpush.bf16.msra.mxu0 0
        %826 = vmatpush.bf16.msra.mxu0 %v788
        %827 = vmatpush.bf16.msra.mxu0 %v786
        %828 = vmatpush.bf16.msra.mxu0 %v784
        %829 = vmatpush.bf16.msra.mxu0 %v782
        %830 = vmatmul.bf16.gmra.mxu0 %v798
        %v831 = vpop.f32.mrf.mxu0
        %v832 = vadd.f32 0.0, %v831
        %v833 = vpop.f32.mrf.mxu0
        %v834 = vadd.f32 0.0, %v833
        %835 = vmatmul.bf16.gmra.mxu0 %v801
        %v836 = vpop.f32.mrf.mxu0
        %v837 = vadd.f32 0.0, %v836
        %v838 = vpop.f32.mrf.mxu0
        %v839 = vadd.f32 0.0, %v838
        %840 = vdwg.mxu0
        %v841 = vadd.f32 %v720, %v813
        %v842 = vadd.f32 %v739, %v832
        %v843 = vadd.f32 %v722, %v815
        %v844 = vadd.f32 %v741, %v834
        %v845 = vadd.f32 %v725, %v818
        %v846 = vadd.f32 %v744, %v837
        %v847 = vadd.f32 %v727, %v820
        %v848 = vadd.f32 %v746, %v839
        %v849 = vld [vmem:[%s2] sm:$0x3]
        %v851 = vperm.slane %v849, 0
        %v852 = vperm.slane %v849, 1
        %v855 = vadd.f32 %v841, %v851
        %v856 = vadd.f32 %v842, %v852
        %v857 = vadd.f32 %v843, %v851
        %v858 = vadd.f32 %v844, %v852
        %v859 = vadd.f32 %v845, %v851
        %v860 = vadd.f32 %v846, %v852
        %v861 = vadd.f32 %v847, %v851
        %v862 = vadd.f32 %v848, %v852
        %s863 = smul.u32 %s25, 8
        %s864 = smul.addr %s863, 8
        %s865 = scalar_lea.vmem [#allocation2], %s864
        %866 = vst [vmem:[%s865] sm:$0xff] %v855
        %867 = vst [vmem:[%s865 + $0x8] sm:$0xff] %v856
        %868 = vst [vmem:[%s865 + $0x10] sm:$0xff] %v857
        %869 = vst [vmem:[%s865 + $0x18] sm:$0xff] %v858
        %870 = vst [vmem:[%s865 + $0x20] sm:$0xff] %v859
        %871 = vst [vmem:[%s865 + $0x28] sm:$0xff] %v860
        %872 = vst [vmem:[%s865 + $0x30] sm:$0xff] %v861
        %873 = vst [vmem:[%s865 + $0x38] sm:$0xff] %v862
        %v874 = vadd.f32 %v855, %v857
        %v875 = vadd.f32 %v874, %v859
        %v876 = vadd.f32 %v875, %v861
        %v877 = vrot.slane %v876, 4
        %v878 = vadd.f32 %v876, %v877
        %v879 = vrot.slane %v878, 2
        %v880 = vadd.f32 %v878, %v879
        %v881 = vrot.slane %v880, 1
        %v882 = vadd.f32 %v880, %v881
        %v883 = vadd.f32 %v856, %v858
        %v884 = vadd.f32 %v883, %v860
        %v885 = vadd.f32 %v884, %v862
        %v886 = vrot.slane %v885, 4
        %v887 = vadd.f32 %v885, %v886
        %v888 = vrot.slane %v887, 2
        %v889 = vadd.f32 %v887, %v888
        %v890 = vrot.slane %v889, 1
        %v891 = vadd.f32 %v889, %v890
        %v892 = vld [vmem:[%s4] sm:$0xff]
        %v893 = vld [vmem:[%s4 + $0x8] sm:$0xff]
        %v894 = vld [vmem:[%s4 + $0x10] sm:$0xff]
        %v895 = vld [vmem:[%s4 + $0x18] sm:$0xff]
        %v896 = vld [vmem:[%s4 + $0x20] sm:$0xff]
        %v897 = vld [vmem:[%s4 + $0x28] sm:$0xff]
        %v898 = vld [vmem:[%s4 + $0x30] sm:$0xff]
        %v899 = vld [vmem:[%s4 + $0x38] sm:$0xff]
        %v900 = vld [vmem:[%s4 + $0x40] sm:$0xff]
        %v901 = vld [vmem:[%s4 + $0x48] sm:$0xff]
        %v902 = vld [vmem:[%s4 + $0x50] sm:$0xff]
        %v903 = vld [vmem:[%s4 + $0x58] sm:$0xff]
        %v904 = vld [vmem:[%s4 + $0x60] sm:$0xff]
        %v905 = vld [vmem:[%s4 + $0x68] sm:$0xff]
        %v906 = vld [vmem:[%s4 + $0x70] sm:$0xff]
        %v907 = vld [vmem:[%s4 + $0x78] sm:$0xff]
        %v908 = vld [vmem:[%s4 + $0x80] sm:$0xff]
        %v909 = vld [vmem:[%s4 + $0x88] sm:$0xff]
        %v910 = vld [vmem:[%s4 + $0x90] sm:$0xff]
        %v911 = vld [vmem:[%s4 + $0x98] sm:$0xff]
        %v912 = vld [vmem:[%s4 + $0xa0] sm:$0xff]
        %v913 = vld [vmem:[%s4 + $0xa8] sm:$0xff]
        %v914 = vld [vmem:[%s4 + $0xb0] sm:$0xff]
        %v915 = vld [vmem:[%s4 + $0xb8] sm:$0xff]
        %v916 = vld [vmem:[%s4 + $0xc0] sm:$0xff]
        %v917 = vld [vmem:[%s4 + $0xc8] sm:$0xff]
        %v918 = vld [vmem:[%s4 + $0xd0] sm:$0xff]
        %v919 = vld [vmem:[%s4 + $0xd8] sm:$0xff]
        %v920 = vld [vmem:[%s4 + $0xe0] sm:$0xff]
        %v921 = vld [vmem:[%s4 + $0xe8] sm:$0xff]
        %v922 = vld [vmem:[%s4 + $0xf0] sm:$0xff]
        %v923 = vld [vmem:[%s4 + $0xf8] sm:$0xff]
        %924 = vmatpush.msra.mxu0 %v907
        %925 = vmatpush.msra.mxu0 %v906
        %926 = vmatpush.msra.mxu0 %v905
        %927 = vmatpush.msra.mxu0 %v904
        %928 = vmatpush.msra.mxu0 %v903
        %929 = vmatpush.msra.mxu0 %v902
        %930 = vmatpush.msra.mxu0 %v901
        %931 = vmatpush.msra.mxu0 %v900
        %932 = vmatpush.msra.mxu0 %v899
        %933 = vmatpush.msra.mxu0 %v898
        %934 = vmatpush.msra.mxu0 %v897
        %935 = vmatpush.msra.mxu0 %v896
        %936 = vmatpush.msra.mxu0 %v895
        %937 = vmatpush.msra.mxu0 %v894
        %938 = vmatpush.msra.mxu0 %v893
        %939 = vmatpush.msra.mxu0 %v892
        %940 = vmatmul.f32.gmra.mxu0 %v882
        %v941 = vpop.f32.mrf.mxu0
        %v942 = vadd.f32 0.0, %v941
        %943 = vdwg.mxu0
        %944 = vmatpush.msra.mxu0 %v923
        %945 = vmatpush.msra.mxu0 %v922
        %946 = vmatpush.msra.mxu0 %v921
        %947 = vmatpush.msra.mxu0 %v920
        %948 = vmatpush.msra.mxu0 %v919
        %949 = vmatpush.msra.mxu0 %v918
        %950 = vmatpush.msra.mxu0 %v917
        %951 = vmatpush.msra.mxu0 %v916
        %952 = vmatpush.msra.mxu0 %v915
        %953 = vmatpush.msra.mxu0 %v914
        %954 = vmatpush.msra.mxu0 %v913
        %955 = vmatpush.msra.mxu0 %v912
        %956 = vmatpush.msra.mxu0 %v911
        %957 = vmatpush.msra.mxu0 %v910
        %958 = vmatpush.msra.mxu0 %v909
        %959 = vmatpush.msra.mxu0 %v908
        %960 = vmatmul.f32.gmra.mxu0 %v891
        %v961 = vpop.f32.mrf.mxu0
        %v962 = vadd.f32 %v942, %v961
        %963 = vdwg.mxu0
        %v964 = vmul.f32 %v962, 0.001953125
        %v965 = vld [vmem:[%s5] sm:$0xff]
        %v966 = vld [vmem:[%s5 + $0x8] sm:$0xff]
        %v967 = vld [vmem:[%s5 + $0x10] sm:$0xff]
        %v968 = vld [vmem:[%s5 + $0x18] sm:$0xff]
        %vm969 = vcmask 130048
        %v971 = vsel %vm969, %v964, 0
        %973 = vmatpush.msra.mxu0 0.0
        %974 = vmatpush.msra.mxu0 0.0
        %975 = vmatpush.msra.mxu0 0.0
        %976 = vmatpush.msra.mxu0 0.0
        %977 = vmatpush.msra.mxu0 0.0
        %978 = vmatpush.msra.mxu0 0.0
        %979 = vmatpush.msra.mxu0 0.0
        %980 = vmatpush.msra.mxu0 0.0
        %981 = vmatpush.msra.mxu0 0.0
        %982 = vmatpush.msra.mxu0 0.0
        %983 = vmatpush.msra.mxu0 0.0
        %984 = vmatpush.msra.mxu0 0.0
        %985 = vmatpush.msra.mxu0 0.0
        %986 = vmatpush.msra.mxu0 0.0
        %987 = vmatpush.msra.mxu0 %v967
        %988 = vmatpush.msra.mxu0 %v965
        %989 = vmatmul.f32.gmra.mxu0 %v971
        %v990 = vpop.f32.mrf.mxu0
        %v991 = vadd.f32 0.0, %v990
        %992 = vdwg.mxu0
        %993 = vmatpush.msra.mxu0 0.0
        %994 = vmatpush.msra.mxu0 0.0
        %995 = vmatpush.msra.mxu0 0.0
        %996 = vmatpush.msra.mxu0 0.0
        %997 = vmatpush.msra.mxu0 0.0
        %998 = vmatpush.msra.mxu0 0.0
        %999 = vmatpush.msra.mxu0 0.0
        %1000 = vmatpush.msra.mxu0 0.0
        %1001 = vmatpush.msra.mxu0 0.0
        %1002 = vmatpush.msra.mxu0 0.0
        %1003 = vmatpush.msra.mxu0 0.0
        %1004 = vmatpush.msra.mxu0 0.0
        %1005 = vmatpush.msra.mxu0 0.0
        %1006 = vmatpush.msra.mxu0 0.0
        %1007 = vmatpush.msra.mxu0 %v968
        %1008 = vmatpush.msra.mxu0 %v966
        %1009 = vmatmul.f32.gmra.mxu0 %v971
        %v1010 = vpop.f32.mrf.mxu0
        %v1011 = vadd.f32 0.0, %v1010
        %1012 = vdwg.mxu0
        %v1013 = vperm.slane %v991, 0
        %v1014 = vperm.slane %v1011, 0
        %v1015 = vsub.f32 %v855, %v1013
        %v1016 = vsub.f32 %v856, %v1014
        %v1017 = vsub.f32 %v857, %v1013
        %v1018 = vsub.f32 %v858, %v1014
        %v1019 = vsub.f32 %v859, %v1013
        %v1020 = vsub.f32 %v860, %v1014
        %v1021 = vsub.f32 %v861, %v1013
        %v1022 = vsub.f32 %v862, %v1014
        %v1023 = vmul.f32 %v1015, %v1015
        %v1024 = vmul.f32 %v1016, %v1016
        %v1025 = vmul.f32 %v1017, %v1017
        %v1026 = vmul.f32 %v1018, %v1018
        %v1027 = vmul.f32 %v1019, %v1019
        %v1028 = vmul.f32 %v1020, %v1020
        %v1029 = vmul.f32 %v1021, %v1021
        %v1030 = vmul.f32 %v1022, %v1022
        %v1031 = vadd.f32 %v1023, %v1025
        %v1032 = vadd.f32 %v1031, %v1027
        %v1033 = vadd.f32 %v1032, %v1029
        %v1034 = vrot.slane %v1033, 4
        %v1035 = vadd.f32 %v1033, %v1034
        %v1036 = vrot.slane %v1035, 2
        %v1037 = vadd.f32 %v1035, %v1036
        %v1038 = vrot.slane %v1037, 1
        %v1039 = vadd.f32 %v1037, %v1038
        %v1040 = vadd.f32 %v1024, %v1026
        %v1041 = vadd.f32 %v1040, %v1028
        %v1042 = vadd.f32 %v1041, %v1030
        %v1043 = vrot.slane %v1042, 4
        %v1044 = vadd.f32 %v1042, %v1043
        %v1045 = vrot.slane %v1044, 2
        %v1046 = vadd.f32 %v1044, %v1045
        %v1047 = vrot.slane %v1046, 1
        %v1048 = vadd.f32 %v1046, %v1047
        %1049 = vmatpush.msra.mxu0 %v907
        %1050 = vmatpush.msra.mxu0 %v906
        %1051 = vmatpush.msra.mxu0 %v905
        %1052 = vmatpush.msra.mxu0 %v904
        %1053 = vmatpush.msra.mxu0 %v903
        %1054 = vmatpush.msra.mxu0 %v902
        %1055 = vmatpush.msra.mxu0 %v901
        %1056 = vmatpush.msra.mxu0 %v900
        %1057 = vmatpush.msra.mxu0 %v899
        %1058 = vmatpush.msra.mxu0 %v898
        %1059 = vmatpush.msra.mxu0 %v897
        %1060 = vmatpush.msra.mxu0 %v896
        %1061 = vmatpush.msra.mxu0 %v895
        %1062 = vmatpush.msra.mxu0 %v894
        %1063 = vmatpush.msra.mxu0 %v893
        %1064 = vmatpush.msra.mxu0 %v892
        %1065 = vmatmul.f32.gmra.mxu0 %v1039
        %v1066 = vpop.f32.mrf.mxu0
        %v1067 = vadd.f32 0.0, %v1066
        %1068 = vdwg.mxu0
        %1069 = vmatpush.msra.mxu0 %v923
        %1070 = vmatpush.msra.mxu0 %v922
        %1071 = vmatpush.msra.mxu0 %v921
        %1072 = vmatpush.msra.mxu0 %v920
        %1073 = vmatpush.msra.mxu0 %v919
        %1074 = vmatpush.msra.mxu0 %v918
        %1075 = vmatpush.msra.mxu0 %v917
        %1076 = vmatpush.msra.mxu0 %v916
        %1077 = vmatpush.msra.mxu0 %v915
        %1078 = vmatpush.msra.mxu0 %v914
        %1079 = vmatpush.msra.mxu0 %v913
        %1080 = vmatpush.msra.mxu0 %v912
        %1081 = vmatpush.msra.mxu0 %v911
        %1082 = vmatpush.msra.mxu0 %v910
        %1083 = vmatpush.msra.mxu0 %v909
        %1084 = vmatpush.msra.mxu0 %v908
        %1085 = vmatmul.f32.gmra.mxu0 %v1048
        %v1086 = vpop.f32.mrf.mxu0
        %v1087 = vadd.f32 %v1067, %v1086
        %1088 = vdwg.mxu0
        %v1089 = vld [vmem:[#allocation3] sm:$0x7]
        %v1090 = vmul.f32 %v962, %v962
        %v1091 = vmul.f32 %v1090, 0.001953125
        %v1093 = vrot.slane %v1091, 7
        %v1096 = vrot.slane %v1087, 6
        %vm1098 = vcmask 1040384
        %v1099 = vsel %vm1098, %v962, %v1093
        %vm1100 = vcmask 1041408
        %v1101 = vsel %vm1100, %v1099, %v1096
        %v1102 = vadd.f32 %v1089, %v1101
        %vm1103 = vcmask 124928
        %1104 = vst.msk [vmem:[#allocation3] sm:$0x7] %vm1103, %v1102
      $region64: #{_lambda_.1} parent=55 // pred_fallthru
        _
      %p1105 = scmp.eq.s32.totalorder %s24, 1
      %p1106 = pnand %p1105, %p432
      %p1107 = pneg %p1106
      // Predicated region
      $region65: #{_lambda_.1} parent=55 // pred_check
        _
      $region66: #{_lambda_.1} parent=55 // pred_check_branch
        %1109 = sbr.rel (%p1106) target = $region68
      $region67: #{_lambda_.1} parent=55 // pred_region
        %v1110 = vld [vmem:[#allocation3] sm:$0x1]
        %v1111 = vld [vmem:[#allocation3 + $0x1] sm:$0x1]
        %v1112 = vld [vmem:[#allocation3 + $0x2] sm:$0x1]
        %v1113 = vmul.f32 %v1110, 0.001953125
        %v1114 = vadd.f32 %v1112, %v1111
        %v1115 = vmul.f32 %v1110, %v1113
        %v1116 = vsub.f32 %v1114, %v1115
        %v1117 = vmul.f32 %v1116, 0.001953125
        %v1118 = vld [vmem:[%s3] sm:$0x1]
        %v1119 = vadd.f32 %v1117, 1e-05
        %v1120 = vrsqrt.pop %v1119
        %v1121 = vmul.f32 %v1120, %v1119
        %v1122 = vmul.f32 %v1121, %v1120
        %v1123 = vmul.f32 0.5, %v1122
        %v1124 = vsub.f32 1.5, %v1123
        %v1125 = vmul.f32 %v1120, %v1124
        %vm1126 = vweird.f32 %v1119
        %vm1127 = vweird.f32 %v1120
        %vm1128 = vmor %vm1126, %vm1127
        %v1129 = vsel %vm1128, %v1120, %v1125
        %v1130 = vmul.f32 %v1118, %v1129
        %v1131 = vld [vmem:[%s3 + $0x1] sm:$0x1]
        %v1132 = vmul.f32 %v1113, %v1130
        %v1133 = vsub.f32 %v1131, %v1132
        %v1135 = vrot.slane %v1133, 7
        %vm1137 = vcmask 1040384
        %v1138 = vsel %vm1137, %v1130, %v1135
        %v1139 = vld [vmem:[%s5] sm:$0xff]
        %v1140 = vld [vmem:[%s5 + $0x8] sm:$0xff]
        %v1141 = vld [vmem:[%s5 + $0x10] sm:$0xff]
        %v1142 = vld [vmem:[%s5 + $0x18] sm:$0xff]
        %vm1143 = vcmask 130048
        %v1145 = vsel %vm1143, %v1138, 0
        %1147 = vmatpush.msra.mxu0 0.0
        %1148 = vmatpush.msra.mxu0 0.0
        %1149 = vmatpush.msra.mxu0 0.0
        %1150 = vmatpush.msra.mxu0 0.0
        %1151 = vmatpush.msra.mxu0 0.0
        %1152 = vmatpush.msra.mxu0 0.0
        %1153 = vmatpush.msra.mxu0 0.0
        %1154 = vmatpush.msra.mxu0 0.0
        %1155 = vmatpush.msra.mxu0 0.0
        %1156 = vmatpush.msra.mxu0 0.0
        %1157 = vmatpush.msra.mxu0 0.0
        %1158 = vmatpush.msra.mxu0 0.0
        %1159 = vmatpush.msra.mxu0 0.0
        %1160 = vmatpush.msra.mxu0 0.0
        %1161 = vmatpush.msra.mxu0 %v1141
        %1162 = vmatpush.msra.mxu0 %v1139
        %1163 = vmatmul.f32.gmra.mxu0 %v1145
        %v1164 = vpop.f32.mrf.mxu0
        %v1165 = vadd.f32 0.0, %v1164
        %1166 = vdwg.mxu0
        %1167 = vmatpush.msra.mxu0 0.0
        %1168 = vmatpush.msra.mxu0 0.0
        %1169 = vmatpush.msra.mxu0 0.0
        %1170 = vmatpush.msra.mxu0 0.0
        %1171 = vmatpush.msra.mxu0 0.0
        %1172 = vmatpush.msra.mxu0 0.0
        %1173 = vmatpush.msra.mxu0 0.0
        %1174 = vmatpush.msra.mxu0 0.0
        %1175 = vmatpush.msra.mxu0 0.0
        %1176 = vmatpush.msra.mxu0 0.0
        %1177 = vmatpush.msra.mxu0 0.0
        %1178 = vmatpush.msra.mxu0 0.0
        %1179 = vmatpush.msra.mxu0 0.0
        %1180 = vmatpush.msra.mxu0 0.0
        %1181 = vmatpush.msra.mxu0 %v1142
        %1182 = vmatpush.msra.mxu0 %v1140
        %1183 = vmatmul.f32.gmra.mxu0 %v1145
        %v1184 = vpop.f32.mrf.mxu0
        %v1185 = vadd.f32 0.0, %v1184
        %1186 = vdwg.mxu0
        %v1189 = vrot.slane %v1185, 6
        %vm1190 = vcmask 1041408
        %v1191 = vsel %vm1190, %v1165, %v1189
        %1193 = vst [vmem:[#allocation4] sm:$0xf] %v1191
      $region68: #{_lambda_.1} parent=55 // pred_fallthru
        _
      // Predicated region
      $region69: #{_lambda_.1} parent=55 // pred_check
        %p1194 = pneg %p1105
      $region70: #{_lambda_.1} parent=55 // pred_check_branch
        %1196 = sbr.rel (%p1194) target = $region72
      $region71: #{_lambda_.1} parent=55 // pred_region
        %s1197 = smul.u32 %s25, 8
        %s1198 = smul.addr %s1197, 8
        %s1199 = scalar_lea.vmem [#allocation2], %s1198
        %v1200 = vld [vmem:[%s1199] sm:$0xff]
        %v1201 = vld [vmem:[%s1199 + $0x8] sm:$0xff]
        %v1202 = vld [vmem:[%s1199 + $0x10] sm:$0xff]
        %v1203 = vld [vmem:[%s1199 + $0x18] sm:$0xff]
        %v1204 = vld [vmem:[%s1199 + $0x20] sm:$0xff]
        %v1205 = vld [vmem:[%s1199 + $0x28] sm:$0xff]
        %v1206 = vld [vmem:[%s1199 + $0x30] sm:$0xff]
        %v1207 = vld [vmem:[%s1199 + $0x38] sm:$0xff]
        %v1208 = vld [vmem:[#allocation4] ss:$2 sm:$0x3]
        %v1210 = vperm.slane %v1208, 0
        %v1211 = vperm.slane %v1208, 1
        %v1214 = vmul.f32 %v1200, %v1210
        %v1215 = vmul.f32 %v1201, %v1211
        %v1216 = vmul.f32 %v1202, %v1210
        %v1217 = vmul.f32 %v1203, %v1211
        %v1218 = vmul.f32 %v1204, %v1210
        %v1219 = vmul.f32 %v1205, %v1211
        %v1220 = vmul.f32 %v1206, %v1210
        %v1221 = vmul.f32 %v1207, %v1211
        %s1222 = scalar_lea.vmem [#allocation4], 1
        %v1223 = vld [vmem:[%s1222] ss:$2 sm:$0x3]
        %v1225 = vperm.slane %v1223, 0
        %v1226 = vperm.slane %v1223, 1
        %v1229 = vadd.f32 %v1214, %v1225
        %v1230 = vadd.f32 %v1215, %v1226
        %v1231 = vadd.f32 %v1216, %v1225
        %v1232 = vadd.f32 %v1217, %v1226
        %v1233 = vadd.f32 %v1218, %v1225
        %v1234 = vadd.f32 %v1219, %v1226
        %v1235 = vadd.f32 %v1220, %v1225
        %v1236 = vadd.f32 %v1221, %v1226
        %v1237 = vld [vmem:[%s6] sm:$0x1]
        %vm1238 = vcmp.gt.f32.partialorder %v1229, 0.0
        %vm1239 = vcmp.gt.f32.partialorder %v1231, 0.0
        %vm1240 = vcmp.gt.f32.partialorder %v1233, 0.0
        %vm1241 = vcmp.gt.f32.partialorder %v1235, 0.0
        %v1243 = vperm.slane %v1237, 0
        %v1245 = vmul.f32 %v1229, %v1243
        %v1246 = vmul.f32 %v1231, %v1243
        %v1247 = vmul.f32 %v1233, %v1243
        %v1248 = vmul.f32 %v1235, %v1243
        %v1249 = vsel %vm1238, %v1229, %v1245
        %v1250 = vsel %vm1239, %v1231, %v1246
        %v1251 = vsel %vm1240, %v1233, %v1247
        %v1252 = vsel %vm1241, %v1235, %v1248
        %v1253 = vpack.c.bf16 %v1249, %v1249
        %v1254 = vpack.c.bf16 %v1250, %v1250
        %v1255 = vpack.c.bf16 %v1251, %v1251
        %v1256 = vpack.c.bf16 %v1252, %v1252
        %vm1257 = vcmp.gt.f32.partialorder %v1230, 0.0
        %vm1258 = vcmp.gt.f32.partialorder %v1232, 0.0
        %vm1259 = vcmp.gt.f32.partialorder %v1234, 0.0
        %vm1260 = vcmp.gt.f32.partialorder %v1236, 0.0
        %v1261 = vmul.f32 %v1230, %v1243
        %v1262 = vmul.f32 %v1232, %v1243
        %v1263 = vmul.f32 %v1234, %v1243
        %v1264 = vmul.f32 %v1236, %v1243
        %v1265 = vsel %vm1257, %v1230, %v1261
        %v1266 = vsel %vm1258, %v1232, %v1262
        %v1267 = vsel %vm1259, %v1234, %v1263
        %v1268 = vsel %vm1260, %v1236, %v1264
        %v1269 = vpack.c.bf16 %v1265, %v1265
        %v1270 = vpack.c.bf16 %v1266, %v1266
        %v1271 = vpack.c.bf16 %v1267, %v1267
        %v1272 = vpack.c.bf16 %v1268, %v1268
        %v1277 = vunpack.c.l.b16 %v1269
        %v1278 = vunpack.c.l.b16 %v1270
        %v1279 = vunpack.c.l.b16 %v1271
        %v1280 = vunpack.c.l.b16 %v1272
        %v1281 = vpack.c.b16 %v1278, %v1277
        %v1282 = vpack.c.b16 %v1280, %v1279
        %vm1283 = vsmask.f32 256
        %v1285 = vshrl.u32 %v1281, 16
        %v1287 = vrot.slane %v1285, 7
        %v1288 = vshll.u32 %v1281, 16
        %v1290 = vor.u32 %v1287, %v1288
        %v1292 = vshrl.u32 %v1282, 16
        %v1294 = vrot.slane %v1292, 7
        %v1295 = vshll.u32 %v1282, 16
        %v1297 = vor.u32 %v1294, %v1295
        %v1298 = vsel %vm1283, %v1287, %v1297
        %vm1301 = vcmask 1040384
        %vm1302 = vmand %vm1301, %vm1283
        %v1303 = vsel %vm1302, 0, %v1290
        %v1304 = vsel %vm423, 1, 0
        %v1305 = vsel %vm424, 1, 0
        %v1306 = vsel %vm425, 1, 0
        %v1307 = vsel %vm426, 1, 0
        %vm1308 = vcmp.eq.s32.totalorder %v1304, 1
        %vm1309 = vcmp.eq.s32.totalorder %v1305, 1
        %vm1310 = vcmp.eq.s32.totalorder %v1306, 1
        %vm1311 = vcmp.eq.s32.totalorder %v1307, 1
        %vm1312 = vmpackc.low %vm1308, %vm1308
        %vm1313 = vmpackc.low %vm1309, %vm1309
        %vm1314 = vmpackc.low %vm1310, %vm1310
        %vm1315 = vmpackc.low %vm1311, %vm1311
        %v1316 = vsel %vm1312, 65537, 0
        %v1317 = vsel %vm1313, 65537, 0
        %v1318 = vsel %vm1314, 65537, 0
        %v1319 = vsel %vm1315, 65537, 0
        %v1320 = vunpack.c.l.b16 %v1316
        %v1321 = vunpack.c.l.b16 %v1317
        %v1322 = vunpack.c.l.b16 %v1318
        %v1323 = vunpack.c.l.b16 %v1319
        %v1324 = vpack.c.b16 %v1321, %v1320
        %v1325 = vpack.c.b16 %v1323, %v1322
        %v1326 = vunpack.c.l.b16 %v1324
        %v1327 = vunpack.c.h.b16 %v1324
        %v1328 = vunpack.c.l.b16 0
        %v1329 = vunpack.c.h.b16 0
        %vm1330 = vcmp.ne.s32.totalorder %v1326, %v1328
        %vm1331 = vcmp.ne.s32.totalorder %v1327, %v1329
        %vm1332 = vmpackc.low %vm1331, %vm1330
        %v1333 = vunpack.c.l.b16 %v1325
        %v1334 = vunpack.c.h.b16 %v1325
        %v1335 = vunpack.c.l.b16 0
        %v1336 = vunpack.c.h.b16 0
        %vm1337 = vcmp.ne.s32.totalorder %v1333, %v1335
        %vm1338 = vcmp.ne.s32.totalorder %v1334, %v1336
        %vm1339 = vmpackc.low %vm1338, %vm1337
        %v1340 = vsel %vm1332, %v1303, 0
        %v1341 = vsel %vm1339, %v1298, 0
        %v1342 = vld [vmem:[%s7] sm:$0xf]
        %v1343 = vld [vmem:[%s7 + $0x4] sm:$0xf]
        %v1344 = vld [vmem:[%s7 + $0x8] sm:$0xf]
        %v1345 = vld [vmem:[%s7 + $0xc] sm:$0xf]
        %v1346 = vld [vmem:[%s7 + $0x10] sm:$0xf]
        %v1347 = vld [vmem:[%s7 + $0x14] sm:$0xf]
        %v1348 = vld [vmem:[%s7 + $0x18] sm:$0xf]
        %v1349 = vld [vmem:[%s7 + $0x1c] sm:$0xf]
        %v1350 = vld [vmem:[%s7 + $0x20] sm:$0xf]
        %v1351 = vld [vmem:[%s7 + $0x24] sm:$0xf]
        %v1352 = vld [vmem:[%s7 + $0x28] sm:$0xf]
        %v1353 = vld [vmem:[%s7 + $0x2c] sm:$0xf]
        %v1354 = vld [vmem:[%s7 + $0x30] sm:$0xf]
        %v1355 = vld [vmem:[%s7 + $0x34] sm:$0xf]
        %v1356 = vld [vmem:[%s7 + $0x38] sm:$0xf]
        %v1357 = vld [vmem:[%s7 + $0x3c] sm:$0xf]
        %s1358 = scalar_lea.vmem %s7, 64
        %v1359 = vld [vmem:[%s1358] sm:$0xf]
        %v1360 = vld [vmem:[%s1358 + $0x4] sm:$0xf]
        %v1361 = vld [vmem:[%s1358 + $0x8] sm:$0xf]
        %v1362 = vld [vmem:[%s1358 + $0xc] sm:$0xf]
        %v1363 = vld [vmem:[%s1358 + $0x10] sm:$0xf]
        %v1364 = vld [vmem:[%s1358 + $0x14] sm:$0xf]
        %v1365 = vld [vmem:[%s1358 + $0x18] sm:$0xf]
        %v1366 = vld [vmem:[%s1358 + $0x1c] sm:$0xf]
        %v1367 = vld [vmem:[%s1358 + $0x20] sm:$0xf]
        %v1368 = vld [vmem:[%s1358 + $0x24] sm:$0xf]
        %v1369 = vld [vmem:[%s1358 + $0x28] sm:$0xf]
        %v1370 = vld [vmem:[%s1358 + $0x2c] sm:$0xf]
        %v1371 = vld [vmem:[%s1358 + $0x30] sm:$0xf]
        %v1372 = vld [vmem:[%s1358 + $0x34] sm:$0xf]
        %v1373 = vld [vmem:[%s1358 + $0x38] sm:$0xf]
        %v1374 = vld [vmem:[%s1358 + $0x3c] sm:$0xf]
        %v1379 = vunpack.c.l.b16 %v1253
        %v1380 = vunpack.c.l.b16 %v1254
        %v1381 = vunpack.c.l.b16 %v1255
        %v1382 = vunpack.c.l.b16 %v1256
        %v1383 = vpack.c.b16 %v1380, %v1379
        %v1384 = vpack.c.b16 %v1382, %v1381
        %v1403 = vunpack.c.l.b16 %v1359
        %v1404 = vunpack.c.l.b16 %v1360
        %v1405 = vunpack.c.l.b16 %v1361
        %v1406 = vunpack.c.l.b16 %v1362
        %v1407 = vunpack.c.l.b16 %v1363
        %v1408 = vunpack.c.l.b16 %v1364
        %v1409 = vunpack.c.l.b16 %v1365
        %v1410 = vunpack.c.l.b16 %v1366
        %v1411 = vunpack.c.l.b16 %v1367
        %v1412 = vunpack.c.l.b16 %v1368
        %v1413 = vunpack.c.l.b16 %v1369
        %v1414 = vunpack.c.l.b16 %v1370
        %v1415 = vunpack.c.l.b16 %v1371
        %v1416 = vunpack.c.l.b16 %v1372
        %v1417 = vunpack.c.l.b16 %v1373
        %v1418 = vunpack.c.l.b16 %v1374
        %v1419 = vpack.c.b16 %v1404, %v1403
        %v1420 = vpack.c.b16 %v1406, %v1405
        %v1421 = vpack.c.b16 %v1408, %v1407
        %v1422 = vpack.c.b16 %v1410, %v1409
        %v1423 = vpack.c.b16 %v1412, %v1411
        %v1424 = vpack.c.b16 %v1414, %v1413
        %v1425 = vpack.c.b16 %v1416, %v1415
        %v1426 = vpack.c.b16 %v1418, %v1417
        %1435 = vmatpush.bf16.msra.mxu0 %v1426
        %1436 = vmatpush.bf16.msra.mxu0 %v1425
        %1437 = vmatpush.bf16.msra.mxu0 %v1424
        %1438 = vmatpush.bf16.msra.mxu0 %v1423
        %1439 = vmatpush.bf16.msra.mxu0 %v1422
        %1440 = vmatpush.bf16.msra.mxu0 %v1421
        %1441 = vmatpush.bf16.msra.mxu0 %v1420
        %1442 = vmatpush.bf16.msra.mxu0 %v1419
        %1443 = vmatmul.bf16.gmra.mxu0 %v1383
        %v1444 = vpop.f32.mrf.mxu0
        %v1445 = vadd.f32 0.0, %v1444
        %v1446 = vpop.f32.mrf.mxu0
        %v1447 = vadd.f32 0.0, %v1446
        %1448 = vmatmul.bf16.gmra.mxu0 %v1384
        %v1449 = vpop.f32.mrf.mxu0
        %v1450 = vadd.f32 0.0, %v1449
        %v1451 = vpop.f32.mrf.mxu0
        %v1452 = vadd.f32 0.0, %v1451
        %1453 = vdwg.mxu0
        %v1470 = vunpack.c.l.b16 %v1342
        %v1471 = vunpack.c.l.b16 %v1343
        %v1472 = vunpack.c.l.b16 %v1344
        %v1473 = vunpack.c.l.b16 %v1345
        %v1474 = vunpack.c.l.b16 %v1346
        %v1475 = vunpack.c.l.b16 %v1347
        %v1476 = vunpack.c.l.b16 %v1348
        %v1477 = vunpack.c.l.b16 %v1349
        %v1478 = vunpack.c.l.b16 %v1350
        %v1479 = vunpack.c.l.b16 %v1351
        %v1480 = vunpack.c.l.b16 %v1352
        %v1481 = vunpack.c.l.b16 %v1353
        %v1482 = vunpack.c.l.b16 %v1354
        %v1483 = vunpack.c.l.b16 %v1355
        %v1484 = vunpack.c.l.b16 %v1356
        %v1485 = vunpack.c.l.b16 %v1357
        %v1486 = vpack.c.b16 %v1471, %v1470
        %v1487 = vpack.c.b16 %v1473, %v1472
        %v1488 = vpack.c.b16 %v1475, %v1474
        %v1489 = vpack.c.b16 %v1477, %v1476
        %v1490 = vpack.c.b16 %v1479, %v1478
        %v1491 = vpack.c.b16 %v1481, %v1480
        %v1492 = vpack.c.b16 %v1483, %v1482
        %v1493 = vpack.c.b16 %v1485, %v1484
        %1502 = vmatpush.bf16.msra.mxu0 %v1493
        %1503 = vmatpush.bf16.msra.mxu0 %v1492
        %1504 = vmatpush.bf16.msra.mxu0 %v1491
        %1505 = vmatpush.bf16.msra.mxu0 %v1490
        %1506 = vmatpush.bf16.msra.mxu0 %v1489
        %1507 = vmatpush.bf16.msra.mxu0 %v1488
        %1508 = vmatpush.bf16.msra.mxu0 %v1487
        %1509 = vmatpush.bf16.msra.mxu0 %v1486
        %1510 = vmatmul.bf16.gmra.mxu0 %v1340
        %v1511 = vpop.f32.mrf.mxu0
        %v1512 = vadd.f32 %v1445, %v1511
        %v1513 = vpop.f32.mrf.mxu0
        %v1514 = vadd.f32 %v1447, %v1513
        %1515 = vmatmul.bf16.gmra.mxu0 %v1341
        %v1516 = vpop.f32.mrf.mxu0
        %v1517 = vadd.f32 %v1450, %v1516
        %v1518 = vpop.f32.mrf.mxu0
        %v1519 = vadd.f32 %v1452, %v1518
        %1520 = vdwg.mxu0
        %s1521 = scalar_lea.vmem %s7, 128
        %v1522 = vld [vmem:[%s1521] sm:$0xf]
        %v1523 = vld [vmem:[%s1521 + $0x4] sm:$0xf]
        %v1524 = vld [vmem:[%s1521 + $0x8] sm:$0xf]
        %v1525 = vld [vmem:[%s1521 + $0xc] sm:$0xf]
        %v1526 = vld [vmem:[%s1521 + $0x10] sm:$0xf]
        %v1527 = vld [vmem:[%s1521 + $0x14] sm:$0xf]
        %v1528 = vld [vmem:[%s1521 + $0x18] sm:$0xf]
        %v1529 = vld [vmem:[%s1521 + $0x1c] sm:$0xf]
        %v1530 = vld [vmem:[%s1521 + $0x20] sm:$0xf]
        %v1531 = vld [vmem:[%s1521 + $0x24] sm:$0xf]
        %v1532 = vld [vmem:[%s1521 + $0x28] sm:$0xf]
        %v1533 = vld [vmem:[%s1521 + $0x2c] sm:$0xf]
        %v1534 = vld [vmem:[%s1521 + $0x30] sm:$0xf]
        %v1535 = vld [vmem:[%s1521 + $0x34] sm:$0xf]
        %v1536 = vld [vmem:[%s1521 + $0x38] sm:$0xf]
        %v1537 = vld [vmem:[%s1521 + $0x3c] sm:$0xf]
        %v1556 = vunpack.c.l.b16 %v1522
        %v1557 = vunpack.c.l.b16 %v1523
        %v1558 = vunpack.c.l.b16 %v1524
        %v1559 = vunpack.c.l.b16 %v1525
        %v1560 = vunpack.c.l.b16 %v1526
        %v1561 = vunpack.c.l.b16 %v1527
        %v1562 = vunpack.c.l.b16 %v1528
        %v1563 = vunpack.c.l.b16 %v1529
        %v1564 = vunpack.c.l.b16 %v1530
        %v1565 = vunpack.c.l.b16 %v1531
        %v1566 = vunpack.c.l.b16 %v1532
        %v1567 = vunpack.c.l.b16 %v1533
        %v1568 = vunpack.c.l.b16 %v1534
        %v1569 = vunpack.c.l.b16 %v1535
        %v1570 = vunpack.c.l.b16 %v1536
        %v1571 = vunpack.c.l.b16 %v1537
        %v1572 = vpack.c.b16 %v1557, %v1556
        %v1573 = vpack.c.b16 %v1559, %v1558
        %v1574 = vpack.c.b16 %v1561, %v1560
        %v1575 = vpack.c.b16 %v1563, %v1562
        %v1576 = vpack.c.b16 %v1565, %v1564
        %v1577 = vpack.c.b16 %v1567, %v1566
        %v1578 = vpack.c.b16 %v1569, %v1568
        %v1579 = vpack.c.b16 %v1571, %v1570
        %1588 = vmatpush.bf16.msra.mxu0 %v1579
        %1589 = vmatpush.bf16.msra.mxu0 %v1578
        %1590 = vmatpush.bf16.msra.mxu0 %v1577
        %1591 = vmatpush.bf16.msra.mxu0 %v1576
        %1592 = vmatpush.bf16.msra.mxu0 %v1575
        %1593 = vmatpush.bf16.msra.mxu0 %v1574
        %1594 = vmatpush.bf16.msra.mxu0 %v1573
        %1595 = vmatpush.bf16.msra.mxu0 %v1572
        %1596 = vmatmul.bf16.gmra.mxu0 %v1281
        %v1597 = vpop.f32.mrf.mxu0
        %v1598 = vadd.f32 0.0, %v1597
        %v1599 = vpop.f32.mrf.mxu0
        %v1600 = vadd.f32 0.0, %v1599
        %1601 = vmatmul.bf16.gmra.mxu0 %v1282
        %v1602 = vpop.f32.mrf.mxu0
        %v1603 = vadd.f32 0.0, %v1602
        %v1604 = vpop.f32.mrf.mxu0
        %v1605 = vadd.f32 0.0, %v1604
        %1606 = vdwg.mxu0
        %v1607 = vadd.f32 %v1512, %v1598
        %v1608 = vadd.f32 %v1514, %v1600
        %v1609 = vadd.f32 %v1517, %v1603
        %v1610 = vadd.f32 %v1519, %v1605
        %v1611 = vld [vmem:[%s8] sm:$0x1]
        %v1613 = vperm.slane %v1611, 0
        %v1615 = vadd.f32 %v1607, %v1613
        %v1616 = vadd.f32 %v1608, %v1613
        %v1617 = vadd.f32 %v1609, %v1613
        %v1618 = vadd.f32 %v1610, %v1613
        %1619 = vst [vmem:[%s364] sm:$0xff] %v1615
        %1620 = vst [vmem:[%s364 + $0x10] sm:$0xff] %v1616
        %1621 = vst [vmem:[%s364 + $0x20] sm:$0xff] %v1617
        %1622 = vst [vmem:[%s364 + $0x30] sm:$0xff] %v1618
        %vm1623 = vsmask.f32 7424
        %v1625 = vshrl.u32 %v1383, 16
        %v1627 = vshll.u32 %v1383, 16
        %v1629 = vrot.slane %v1627, 1
        %v1630 = vor.u32 %v1625, %v1629
        %v1632 = vshll.u32 %v1384, 16
        %v1634 = vrot.slane %v1632, 1
        %v1635 = vsel %vm1623, %v1630, %v1634
        %v1636 = vshrl.u32 %v1384, 16
        %v1638 = vor.u32 %v1636, %v1634
        %vm1641 = vcmask 1047552
        %vm1642 = vmand %vm1641, %vm1623
        %v1643 = vsel %vm1642, %v1638, 0
        %v1644 = vsel %vm427, 1, 0
        %v1645 = vsel %vm428, 1, 0
        %v1646 = vsel %vm429, 1, 0
        %v1647 = vsel %vm430, 1, 0
        %vm1648 = vcmp.eq.s32.totalorder %v1644, 1
        %vm1649 = vcmp.eq.s32.totalorder %v1645, 1
        %vm1650 = vcmp.eq.s32.totalorder %v1646, 1
        %vm1651 = vcmp.eq.s32.totalorder %v1647, 1
        %vm1652 = vmpackc.low %vm1648, %vm1648
        %vm1653 = vmpackc.low %vm1649, %vm1649
        %vm1654 = vmpackc.low %vm1650, %vm1650
        %vm1655 = vmpackc.low %vm1651, %vm1651
        %v1656 = vsel %vm1652, 65537, 0
        %v1657 = vsel %vm1653, 65537, 0
        %v1658 = vsel %vm1654, 65537, 0
        %v1659 = vsel %vm1655, 65537, 0
        %v1660 = vunpack.c.l.b16 %v1656
        %v1661 = vunpack.c.l.b16 %v1657
        %v1662 = vunpack.c.l.b16 %v1658
        %v1663 = vunpack.c.l.b16 %v1659
        %v1664 = vpack.c.b16 %v1661, %v1660
        %v1665 = vpack.c.b16 %v1663, %v1662
        %v1666 = vunpack.c.l.b16 %v1664
        %v1667 = vunpack.c.h.b16 %v1664
        %v1668 = vunpack.c.l.b16 0
        %v1669 = vunpack.c.h.b16 0
        %vm1670 = vcmp.ne.s32.totalorder %v1666, %v1668
        %vm1671 = vcmp.ne.s32.totalorder %v1667, %v1669
        %vm1672 = vmpackc.low %vm1671, %vm1670
        %v1673 = vunpack.c.l.b16 %v1665
        %v1674 = vunpack.c.h.b16 %v1665
        %v1675 = vunpack.c.l.b16 0
        %v1676 = vunpack.c.h.b16 0
        %vm1677 = vcmp.ne.s32.totalorder %v1673, %v1675
        %vm1678 = vcmp.ne.s32.totalorder %v1674, %v1676
        %vm1679 = vmpackc.low %vm1678, %vm1677
        %v1680 = vsel %vm1672, %v1635, 0
        %v1681 = vsel %vm1679, %v1643, 0
        %v1682 = vld [vmem:[%s7] sm:$0xf]
        %v1683 = vld [vmem:[%s7 + $0x4] sm:$0xf]
        %v1684 = vld [vmem:[%s7 + $0x8] sm:$0xf]
        %v1685 = vld [vmem:[%s7 + $0xc] sm:$0xf]
        %v1686 = vld [vmem:[%s7 + $0x10] sm:$0xf]
        %v1687 = vld [vmem:[%s7 + $0x14] sm:$0xf]
        %v1688 = vld [vmem:[%s7 + $0x18] sm:$0xf]
        %v1689 = vld [vmem:[%s7 + $0x1c] sm:$0xf]
        %v1690 = vld [vmem:[%s7 + $0x20] sm:$0xf]
        %v1691 = vld [vmem:[%s7 + $0x24] sm:$0xf]
        %v1692 = vld [vmem:[%s7 + $0x28] sm:$0xf]
        %v1693 = vld [vmem:[%s7 + $0x2c] sm:$0xf]
        %v1694 = vld [vmem:[%s7 + $0x30] sm:$0xf]
        %v1695 = vld [vmem:[%s7 + $0x34] sm:$0xf]
        %v1696 = vld [vmem:[%s7 + $0x38] sm:$0xf]
        %v1697 = vld [vmem:[%s7 + $0x3c] sm:$0xf]
        %v1698 = vld [vmem:[%s1358] sm:$0xf]
        %v1699 = vld [vmem:[%s1358 + $0x4] sm:$0xf]
        %v1700 = vld [vmem:[%s1358 + $0x8] sm:$0xf]
        %v1701 = vld [vmem:[%s1358 + $0xc] sm:$0xf]
        %v1702 = vld [vmem:[%s1358 + $0x10] sm:$0xf]
        %v1703 = vld [vmem:[%s1358 + $0x14] sm:$0xf]
        %v1704 = vld [vmem:[%s1358 + $0x18] sm:$0xf]
        %v1705 = vld [vmem:[%s1358 + $0x1c] sm:$0xf]
        %v1706 = vld [vmem:[%s1358 + $0x20] sm:$0xf]
        %v1707 = vld [vmem:[%s1358 + $0x24] sm:$0xf]
        %v1708 = vld [vmem:[%s1358 + $0x28] sm:$0xf]
        %v1709 = vld [vmem:[%s1358 + $0x2c] sm:$0xf]
        %v1710 = vld [vmem:[%s1358 + $0x30] sm:$0xf]
        %v1711 = vld [vmem:[%s1358 + $0x34] sm:$0xf]
        %v1712 = vld [vmem:[%s1358 + $0x38] sm:$0xf]
        %v1713 = vld [vmem:[%s1358 + $0x3c] sm:$0xf]
        %v1730 = vunpack.c.l.b16 %v1698
        %v1731 = vunpack.c.l.b16 %v1699
        %v1732 = vunpack.c.l.b16 %v1700
        %v1733 = vunpack.c.l.b16 %v1701
        %v1734 = vunpack.c.l.b16 %v1702
        %v1735 = vunpack.c.l.b16 %v1703
        %v1736 = vunpack.c.l.b16 %v1704
        %v1737 = vunpack.c.l.b16 %v1705
        %v1738 = vunpack.c.l.b16 %v1706
        %v1739 = vunpack.c.l.b16 %v1707
        %v1740 = vunpack.c.l.b16 %v1708
        %v1741 = vunpack.c.l.b16 %v1709
        %v1742 = vunpack.c.l.b16 %v1710
        %v1743 = vunpack.c.l.b16 %v1711
        %v1744 = vunpack.c.l.b16 %v1712
        %v1745 = vunpack.c.l.b16 %v1713
        %v1746 = vpack.c.b16 %v1731, %v1730
        %v1747 = vpack.c.b16 %v1733, %v1732
        %v1748 = vpack.c.b16 %v1735, %v1734
        %v1749 = vpack.c.b16 %v1737, %v1736
        %v1750 = vpack.c.b16 %v1739, %v1738
        %v1751 = vpack.c.b16 %v1741, %v1740
        %v1752 = vpack.c.b16 %v1743, %v1742
        %v1753 = vpack.c.b16 %v1745, %v1744
        %1762 = vmatpush.bf16.msra.mxu0 %v1753
        %1763 = vmatpush.bf16.msra.mxu0 %v1752
        %1764 = vmatpush.bf16.msra.mxu0 %v1751
        %1765 = vmatpush.bf16.msra.mxu0 %v1750
        %1766 = vmatpush.bf16.msra.mxu0 %v1749
        %1767 = vmatpush.bf16.msra.mxu0 %v1748
        %1768 = vmatpush.bf16.msra.mxu0 %v1747
        %1769 = vmatpush.bf16.msra.mxu0 %v1746
        %1770 = vmatmul.bf16.gmra.mxu0 %v1281
        %v1771 = vpop.f32.mrf.mxu0
        %v1772 = vadd.f32 0.0, %v1771
        %v1773 = vpop.f32.mrf.mxu0
        %v1774 = vadd.f32 0.0, %v1773
        %1775 = vmatmul.bf16.gmra.mxu0 %v1282
        %v1776 = vpop.f32.mrf.mxu0
        %v1777 = vadd.f32 0.0, %v1776
        %v1778 = vpop.f32.mrf.mxu0
        %v1779 = vadd.f32 0.0, %v1778
        %1780 = vdwg.mxu0
        %v1797 = vunpack.c.l.b16 %v1682
        %v1798 = vunpack.c.l.b16 %v1683
        %v1799 = vunpack.c.l.b16 %v1684
        %v1800 = vunpack.c.l.b16 %v1685
        %v1801 = vunpack.c.l.b16 %v1686
        %v1802 = vunpack.c.l.b16 %v1687
        %v1803 = vunpack.c.l.b16 %v1688
        %v1804 = vunpack.c.l.b16 %v1689
        %v1805 = vunpack.c.l.b16 %v1690
        %v1806 = vunpack.c.l.b16 %v1691
        %v1807 = vunpack.c.l.b16 %v1692
        %v1808 = vunpack.c.l.b16 %v1693
        %v1809 = vunpack.c.l.b16 %v1694
        %v1810 = vunpack.c.l.b16 %v1695
        %v1811 = vunpack.c.l.b16 %v1696
        %v1812 = vunpack.c.l.b16 %v1697
        %v1813 = vpack.c.b16 %v1798, %v1797
        %v1814 = vpack.c.b16 %v1800, %v1799
        %v1815 = vpack.c.b16 %v1802, %v1801
        %v1816 = vpack.c.b16 %v1804, %v1803
        %v1817 = vpack.c.b16 %v1806, %v1805
        %v1818 = vpack.c.b16 %v1808, %v1807
        %v1819 = vpack.c.b16 %v1810, %v1809
        %v1820 = vpack.c.b16 %v1812, %v1811
        %1829 = vmatpush.bf16.msra.mxu0 %v1820
        %1830 = vmatpush.bf16.msra.mxu0 %v1819
        %1831 = vmatpush.bf16.msra.mxu0 %v1818
        %1832 = vmatpush.bf16.msra.mxu0 %v1817
        %1833 = vmatpush.bf16.msra.mxu0 %v1816
        %1834 = vmatpush.bf16.msra.mxu0 %v1815
        %1835 = vmatpush.bf16.msra.mxu0 %v1814
        %1836 = vmatpush.bf16.msra.mxu0 %v1813
        %1837 = vmatmul.bf16.gmra.mxu0 %v1383
        %v1838 = vpop.f32.mrf.mxu0
        %v1839 = vadd.f32 %v1772, %v1838
        %v1840 = vpop.f32.mrf.mxu0
        %v1841 = vadd.f32 %v1774, %v1840
        %1842 = vmatmul.bf16.gmra.mxu0 %v1384
        %v1843 = vpop.f32.mrf.mxu0
        %v1844 = vadd.f32 %v1777, %v1843
        %v1845 = vpop.f32.mrf.mxu0
        %v1846 = vadd.f32 %v1779, %v1845
        %1847 = vdwg.mxu0
        %v1848 = vld [vmem:[%s1521] sm:$0xf]
        %v1849 = vld [vmem:[%s1521 + $0x4] sm:$0xf]
        %v1850 = vld [vmem:[%s1521 + $0x8] sm:$0xf]
        %v1851 = vld [vmem:[%s1521 + $0xc] sm:$0xf]
        %v1852 = vld [vmem:[%s1521 + $0x10] sm:$0xf]
        %v1853 = vld [vmem:[%s1521 + $0x14] sm:$0xf]
        %v1854 = vld [vmem:[%s1521 + $0x18] sm:$0xf]
        %v1855 = vld [vmem:[%s1521 + $0x1c] sm:$0xf]
        %v1856 = vld [vmem:[%s1521 + $0x20] sm:$0xf]
        %v1857 = vld [vmem:[%s1521 + $0x24] sm:$0xf]
        %v1858 = vld [vmem:[%s1521 + $0x28] sm:$0xf]
        %v1859 = vld [vmem:[%s1521 + $0x2c] sm:$0xf]
        %v1860 = vld [vmem:[%s1521 + $0x30] sm:$0xf]
        %v1861 = vld [vmem:[%s1521 + $0x34] sm:$0xf]
        %v1862 = vld [vmem:[%s1521 + $0x38] sm:$0xf]
        %v1863 = vld [vmem:[%s1521 + $0x3c] sm:$0xf]
        %v1880 = vunpack.c.l.b16 %v1848
        %v1881 = vunpack.c.l.b16 %v1849
        %v1882 = vunpack.c.l.b16 %v1850
        %v1883 = vunpack.c.l.b16 %v1851
        %v1884 = vunpack.c.l.b16 %v1852
        %v1885 = vunpack.c.l.b16 %v1853
        %v1886 = vunpack.c.l.b16 %v1854
        %v1887 = vunpack.c.l.b16 %v1855
        %v1888 = vunpack.c.l.b16 %v1856
        %v1889 = vunpack.c.l.b16 %v1857
        %v1890 = vunpack.c.l.b16 %v1858
        %v1891 = vunpack.c.l.b16 %v1859
        %v1892 = vunpack.c.l.b16 %v1860
        %v1893 = vunpack.c.l.b16 %v1861
        %v1894 = vunpack.c.l.b16 %v1862
        %v1895 = vunpack.c.l.b16 %v1863
        %v1896 = vpack.c.b16 %v1881, %v1880
        %v1897 = vpack.c.b16 %v1883, %v1882
        %v1898 = vpack.c.b16 %v1885, %v1884
        %v1899 = vpack.c.b16 %v1887, %v1886
        %v1900 = vpack.c.b16 %v1889, %v1888
        %v1901 = vpack.c.b16 %v1891, %v1890
        %v1902 = vpack.c.b16 %v1893, %v1892
        %v1903 = vpack.c.b16 %v1895, %v1894
        %1912 = vmatpush.bf16.msra.mxu0 %v1903
        %1913 = vmatpush.bf16.msra.mxu0 %v1902
        %1914 = vmatpush.bf16.msra.mxu0 %v1901
        %1915 = vmatpush.bf16.msra.mxu0 %v1900
        %1916 = vmatpush.bf16.msra.mxu0 %v1899
        %1917 = vmatpush.bf16.msra.mxu0 %v1898
        %1918 = vmatpush.bf16.msra.mxu0 %v1897
        %1919 = vmatpush.bf16.msra.mxu0 %v1896
        %1920 = vmatmul.bf16.gmra.mxu0 %v1680
        %v1921 = vpop.f32.mrf.mxu0
        %v1922 = vadd.f32 0.0, %v1921
        %v1923 = vpop.f32.mrf.mxu0
        %v1924 = vadd.f32 0.0, %v1923
        %1925 = vmatmul.bf16.gmra.mxu0 %v1681
        %v1926 = vpop.f32.mrf.mxu0
        %v1927 = vadd.f32 0.0, %v1926
        %v1928 = vpop.f32.mrf.mxu0
        %v1929 = vadd.f32 0.0, %v1928
        %1930 = vdwg.mxu0
        %v1931 = vadd.f32 %v1839, %v1922
        %v1932 = vadd.f32 %v1841, %v1924
        %v1933 = vadd.f32 %v1844, %v1927
        %v1934 = vadd.f32 %v1846, %v1929
        %v1935 = vld [vmem:[%s8] sm:$0x1]
        %v1937 = vperm.slane %v1935, 0
        %v1939 = vadd.f32 %v1931, %v1937
        %v1940 = vadd.f32 %v1932, %v1937
        %v1941 = vadd.f32 %v1933, %v1937
        %v1942 = vadd.f32 %v1934, %v1937
        %1943 = vst [vmem:[%s364 + $0x8] sm:$0xff] %v1939
        %1944 = vst [vmem:[%s364 + $0x18] sm:$0xff] %v1940
        %1945 = vst [vmem:[%s364 + $0x28] sm:$0xff] %v1941
        %1946 = vst [vmem:[%s364 + $0x38] sm:$0xff] %v1942
      $region72: #{_lambda_.1} parent=55 // pred_fallthru
        _
      %s1947 = smul.u32 %s25, %s24
      %s1948 = smul.u32 4, %s1947
      %p1949 = scmp.lt.s32.totalorder %s1948, 3
      %s1950 = scalar_select %p1949, %s1948, 3
      %s1951 = smul.addr %s1950, 2
      %s1952 = smul.addr %s1951, 8
      %s1953 = scalar_lea.vmem %s9, %s1952
      // Predicated region
      $region73: #{_lambda_.1} parent=55 // pred_check
        %p1954 = pneg %p250
      $region74: #{_lambda_.1} parent=55 // pred_check_branch
        %1956 = sbr.rel (%p1954) target = $region76
      $region75: #{_lambda_.1} parent=55 // pred_region
        %s1957 = smul.u32 %s25, %s24
        %s1958 = smul.u32 4, %s1957
      $region76: #{_lambda_.1} parent=55 // pred_fallthru
        _
    $region56: #{_lambda_.1} parent=5 // pred_fallthru
      _
    %p1959 = scmp.le.s32.totalorder 2, %s15
    // Predicated region
    $region77: #{_lambda_.1} parent=5 // pred_check
      %p1960 = pneg %p1959
    $region78: #{_lambda_.1} parent=5 // pred_check_branch
      %1962 = sbr.rel (%p1960) target = $region80
    $region79: #{_lambda_.1} parent=5 // pred_region
      %s1963 = ssub.s32 %s15, 2
      // Predicated region
      $region81: #{_lambda_.1} parent=79 // pred_check
        %p1964 = pneg %p256
      $region82: #{_lambda_.1} parent=79 // pred_check_branch
        %1966 = sbr.rel (%p1964) target = $region84
      $region83: #{_lambda_.1} parent=79 // pred_region
        %s1967 = smul.u32 %s27, %s26
        %s1968 = smul.u32 4, %s1967
        %p1969 = scmp.lt.s32.totalorder %s1968, 3
        %s1970 = scalar_select %p1969, %s1968, 3
        %s1971 = smul.addr %s1970, 2
        %s1972 = smul.addr %s1971, 8
        %s1973 = scalar_lea.vmem %s9, %s1972
      $region84: #{_lambda_.1} parent=79 // pred_fallthru
        _
    $region80: #{_lambda_.1} parent=5 // pred_fallthru
      _
  $region6: #{_lambda_.1} parent=0 // loop_footer
    %s19 = sadd.s32 1, %s15
  $region7: #{_lambda_.1} parent=0 // loop_footer_branch
    %14 = sbr.rel target = $region3
  $region8: #{_lambda_.1} parent=0 // loop_exit
    _

</llo_original>
